<compile_context>
chip_gen: v6e
topology: v6e:2x2x1
jax: 0.10.0
libtpu: 0.0.40
codegen_flags: <defaults>
</compile_context>

<pallas_src>
import jax
import jax.numpy as jnp
from jax import lax
from jax.experimental import pallas as pl
from jax.experimental.pallas import tpu as pltpu


# -----------------------------------------------------------------------------
# Pallas kernel: one grid step == `time_chunk` GRU time steps for one batch
# chunk.  Hidden state is carried across time chunks in a VMEM scratch.
# -----------------------------------------------------------------------------
def gru_kernel(uzr_ref,     # (Tc, Bc, 2*N_h)  precomputed u@[W_uz|W_ur] + [b_z|b_r]
               uh_ref,      # (Tc, Bc, N_h)    precomputed u@W_uh + b_h
               w_hzr_ref,   # (N_h, 2*N_h)     [W_hz | W_hr] fused
               w_hh_ref,    # (N_h, N_h)
               w_hy_ref,    # (N_h, N_out_pad) zero-padded columns
               b_y_ref,     # (1, N_out_pad)   -1e30 on padded columns
               h0_ref,      # (1, N_h)
               y_ref,       # (Tc, Bc, N_out_pad)
               h_scratch):  # VMEM (Bc, N_h)   carried hidden state
    n_h = h_scratch.shape[-1]
    t_chunk = pl.program_id(1)

    # (Re)initialize the hidden state at the start of each batch chunk's sequence.
    @pl.when(t_chunk == 0)
    def _():
        h_scratch[...] = jnp.broadcast_to(h0_ref[...], h_scratch.shape)

    # Hoist weight loads out of the inner time loop.
    w_hzr = w_hzr_ref[...]
    w_hh = w_hh_ref[...]
    w_hy = w_hy_ref[...]
    b_y = b_y_ref[...]

    def step(t, h):
        # Fused z/r gates: one (Bc, N_h) x (N_h, 2*N_h) MXU matmul per step.
        zr = jax.nn.sigmoid(
            jnp.dot(h, w_hzr, preferred_element_type=jnp.float32) + uzr_ref[t])
        z = zr[:, :n_h]
        r = zr[:, n_h:]
        h_tilde = jnp.tanh(
            jnp.dot(r * h, w_hh, preferred_element_type=jnp.float32) + uh_ref[t])
        h_new = (1.0 - z) * h + z * h_tilde

        # Readout + softmax over the lane-dense (padded) feature axis.
        # Padded columns have logit -1e30 -> exp underflows to 0, so the
        # softmax over real columns is exactly the unpadded softmax.
        logits = jnp.dot(h_new, w_hy, preferred_element_type=jnp.float32) + b_y
        m = jnp.max(logits, axis=-1, keepdims=True)
        e = jnp.exp(logits - m)
        denom = jnp.sum(e, axis=-1, keepdims=True)
        y_ref[t] = (e * pl.reciprocal(denom, approx=True)).astype(y_ref.dtype)
        return h_new

    h_scratch[...] = lax.fori_loop(
        0, y_ref.shape[0], step, h_scratch[...], unroll=True)


# -----------------------------------------------------------------------------
# Wrapper: parameter fusion/padding, hoisted input projections, grid setup.
# -----------------------------------------------------------------------------
def _round_up(x, m):
    return (x + m - 1) // m * m


def gru_forward(u, params, *, time_chunk=None, batch_chunks=1):
    """u: (B, T, N_in) float32. Returns y: (B, T, N_out) float32 (softmax)."""
    B, T, N_in = u.shape
    N_h = params["W_hz"].shape[0]
    N_out = params["W_hy"].shape[1]

    # ---- time chunking: largest divisor of T up to 32 ----------------------
    if time_chunk is None:
        time_chunk = min(T, 32)
        while T % time_chunk:
            time_chunk -= 1
    assert T % time_chunk == 0
    n_tchunks = T // time_chunk

    # ---- batch chunking (parallel grid axis; megacore on v7x) --------------
    # Keep each batch chunk a multiple of 8 (sublane) when chunking.
    B_pad = _round_up(B, 8 * batch_chunks) if batch_chunks > 1 else B
    Bc = B_pad // batch_chunks

    # ---- fused / padded parameters -----------------------------------------
    w_u_zr = jnp.concatenate([params["W_uz"], params["W_ur"]], axis=1)  # (N_in, 2*N_h)
    b_zr = jnp.concatenate([params["b_z"], params["b_r"]], axis=1)      # (1, 2*N_h)
    w_hzr = jnp.concatenate([params["W_hz"], params["W_hr"]], axis=1)   # (N_h, 2*N_h)

    N_out_pad = _round_up(N_out, 128)
    w_hy = jnp.pad(params["W_hy"], ((0, 0), (0, N_out_pad - N_out)))
    b_y = jnp.pad(params["b_y"], ((0, 0), (0, N_out_pad - N_out)),
                  constant_values=-1e30)

    # ---- hoisted input projections, computed time-major for all T steps ----
    u_p = u if B_pad == B else jnp.pad(u, ((0, B_pad - B), (0, 0), (0, 0)))
    uproj_zr = jnp.einsum("btk,kn->tbn", u_p, w_u_zr) + b_zr            # (T, B_pad, 2*N_h)
    uproj_h = jnp.einsum("btk,kn->tbn", u_p, params["W_uh"]) + params["b_h"]

    const = lambda r, c: pl.BlockSpec((r, c), lambda b, t: (0, 0))

    grid_spec = pltpu.PrefetchScalarGridSpec(
        num_scalar_prefetch=0,
        grid=(batch_chunks, n_tchunks),  # (parallel batch chunks, sequential time)
        in_specs=[
            pl.BlockSpec((time_chunk, Bc, 2 * N_h), lambda b, t: (t, b, 0)),
            pl.BlockSpec((time_chunk, Bc, N_h), lambda b, t: (t, b, 0)),
            const(N_h, 2 * N_h),    # [W_hz | W_hr]
            const(N_h, N_h),        # W_hh
            const(N_h, N_out_pad),  # W_hy (lane-padded)
            const(1, N_out_pad),    # b_y  (lane-padded)
            const(1, N_h),          # h0
        ],
        out_specs=pl.BlockSpec((time_chunk, Bc, N_out_pad), lambda b, t: (t, b, 0)),
        scratch_shapes=[pltpu.VMEM((Bc, N_h), jnp.float32)],
    )

    y_tm = pl.pallas_call(
        gru_kernel,
        out_shape=jax.ShapeDtypeStruct((T, B_pad, N_out_pad), jnp.float32),
        grid_spec=grid_spec,
        compiler_params=pltpu.CompilerParams(
            # Batch chunks are independent -> shardable across v7x's 2 TCs;
            # the time axis carries the recurrence and must stay sequential.
            dimension_semantics=("parallel", "arbitrary"),
            vmem_limit_bytes=32 * 1024 * 1024,
        ),
    )(uproj_zr, uproj_h, w_hzr, params["W_hh"], w_hy, b_y, params["h0"])

    # Slice off batch/feature padding; return batch-major (B, T, N_out).
    return jnp.transpose(y_tm[:, :B, :N_out], (1, 0, 2))


# -----------------------------------------------------------------------------
# Pure-JAX reference (mirrors the PyTorch forward) for correctness checking.
# -----------------------------------------------------------------------------
def gru_reference(u, params):
    B, T, _ = u.shape
    h = jnp.broadcast_to(params["h0"], (B, params["W_hz"].shape[0]))

    def step(h, u_t):
        z = jax.nn.sigmoid(h @ params["W_hz"] + u_t @ params["W_uz"] + params["b_z"])
        r = jax.nn.sigmoid(h @ params["W_hr"] + u_t @ params["W_ur"] + params["b_r"])
        h_tilde = jnp.tanh((r * h) @ params["W_hh"] + u_t @ params["W_uh"] + params["b_h"])
        h = (1.0 - z) * h + z * h_tilde
        y = jax.nn.softmax(h @ params["W_hy"] + params["b_y"], axis=-1)
        return h, y

    _, y_tm = lax.scan(step, h, jnp.transpose(u, (1, 0, 2)))
    return jnp.transpose(y_tm, (1, 0, 2))


# -----------------------------------------------------------------------------
# Deterministic parameter init (stand-in for sparse_normal_weights).
# -----------------------------------------------------------------------------
def init_params(key, N_in, N_h, N_out):
    ks = jax.random.split(key, 8)

    def w(k, fan_in, fan_out):
        return (jax.random.normal(k, (fan_in, fan_out), jnp.float32)
                / jnp.sqrt(jnp.float32(fan_in)))

    return {
        "W_uz": w(ks[0], N_in, N_h),
        "W_ur": w(ks[1], N_in, N_h),
        "W_uh": w(ks[2], N_in, N_h),
        "W_hz": w(ks[3], N_h, N_h),
        "W_hr": w(ks[4], N_h, N_h),
        "W_hh": w(ks[5], N_h, N_h),
        "W_hy": w(ks[6], N_h, N_out),
        "b_z": jnp.zeros((1, N_h), jnp.float32),
        "b_r": jnp.zeros((1, N_h), jnp.float32),
        "b_h": jnp.zeros((1, N_h), jnp.float32),
        "b_y": jnp.zeros((1, N_out), jnp.float32),
        "h0": jax.random.normal(ks[7], (1, N_h), jnp.float32),
    }


if __name__ == "__main__":
    B, T, N_in, N_h, N_out = 2, 8, 4, 32, 8

    key = jax.random.PRNGKey(0)
    k_u, k_p = jax.random.split(key)
    u = jax.random.normal(k_u, (B, T, N_in), jnp.float32)
    params = init_params(k_p, N_in, N_h, N_out)

    y_ref = jax.block_until_ready(gru_reference(u, params))

    # Default path: single batch chunk, chunked time grid.
    y = jax.block_until_ready(gru_forward(u, params))
    assert y.shape == (B, T, N_out)
    # Tolerance loosened for pl.reciprocal(approx=True) in the softmax.
    assert jnp.allclose(y, y_ref, rtol=2e-3, atol=2e-3), \
        f"max abs err = {jnp.max(jnp.abs(y - y_ref))}"

    # v7x-style path: parallel batch-chunk grid axis (padded batch, 2 chunks).
    y2 = jax.block_until_ready(gru_forward(u, params, batch_chunks=2))
    assert y2.shape == (B, T, N_out)
    assert jnp.allclose(y2, y_ref, rtol=2e-3, atol=2e-3), \
        f"max abs err (batch_chunks=2) = {jnp.max(jnp.abs(y2 - y_ref))}"

    print("KERNEL_OK")
</pallas_src>

<mosaic_0001>
module attributes {stable_mosaic.version = 11 : i64} {
  func.func @gru_kernel(%arg0: i32, %arg1: i32, %arg2: memref<8x2x64xf32, #tpu.memory_space<vmem>>, %arg3: memref<8x2x32xf32, #tpu.memory_space<vmem>>, %arg4: memref<32x64xf32, #tpu.memory_space<vmem>>, %arg5: memref<32x32xf32, #tpu.memory_space<vmem>>, %arg6: memref<32x128xf32, #tpu.memory_space<vmem>>, %arg7: memref<1x128xf32, #tpu.memory_space<vmem>>, %arg8: memref<1x32xf32, #tpu.memory_space<vmem>>, %arg9: memref<8x2x128xf32, #tpu.memory_space<vmem>>, %arg10: memref<2x32xf32, #tpu.memory_space<vmem>>) attributes {dimension_semantics = [#tpu.dimension_semantics<parallel>, #tpu.dimension_semantics<arbitrary>], iteration_bounds = array<i64: 1, 1>, scalar_prefetch = 0 : i64, scratch_operands = 1 : i64, tpu.core_type = #tpu.core_type<tc>, window_params = [{transform_indices = @transform_0, window_bounds = array<i64: 8, 2, 64>}, {transform_indices = @transform_1, window_bounds = array<i64: 8, 2, 32>}, {pipeline_mode = #tpu.pipeline_mode<synchronous>, transform_indices = @transform_2, window_bounds = array<i64: 32, 64>}, {pipeline_mode = #tpu.pipeline_mode<synchronous>, transform_indices = @transform_3, window_bounds = array<i64: 32, 32>}, {pipeline_mode = #tpu.pipeline_mode<synchronous>, transform_indices = @transform_4, window_bounds = array<i64: 32, 128>}, {pipeline_mode = #tpu.pipeline_mode<synchronous>, transform_indices = @transform_5, window_bounds = array<i64: 1, 128>}, {pipeline_mode = #tpu.pipeline_mode<synchronous>, transform_indices = @transform_6, window_bounds = array<i64: 1, 32>}, {transform_indices = @transform_7, window_bounds = array<i64: 8, 2, 128>}]} {
    %c0_i32 = arith.constant 0 : i32
    %0 = arith.cmpi eq, %arg1, %c0_i32 : i32
    %1 = arith.extui %0 : i1 to i32
    %c0_i32_0 = arith.constant 0 : i32
    %2 = arith.cmpi ne, %1, %c0_i32_0 : i32
    scf.if %2 {
      %c0_116 = arith.constant 0 : index
      %c0_117 = arith.constant 0 : index
      %337 = vector.load %arg8[%c0_116, %c0_117] : memref<1x32xf32, #tpu.memory_space<vmem>>, vector<1x32xf32>
      %338 = vector.shape_cast %337 : vector<1x32xf32> to vector<1x32xf32>
      %339 = vector.broadcast %338 : vector<1x32xf32> to vector<2x32xf32>
      %c0_118 = arith.constant 0 : index
      %c0_119 = arith.constant 0 : index
      %340 = vector.load %arg10[%c0_118, %c0_119] : memref<2x32xf32, #tpu.memory_space<vmem>>, vector<2x32xf32>
      tpu.vector_store %arg10[%c0_118, %c0_119], %339 {strides = array<i32>} : memref<2x32xf32, #tpu.memory_space<vmem>>, vector<2x32xf32>,
    } else {
    }
    %c0 = arith.constant 0 : index
    %c0_1 = arith.constant 0 : index
    %3 = vector.load %arg4[%c0, %c0_1] : memref<32x64xf32, #tpu.memory_space<vmem>>, vector<32x64xf32>
    %c0_2 = arith.constant 0 : index
    %c0_3 = arith.constant 0 : index
    %4 = vector.load %arg5[%c0_2, %c0_3] : memref<32x32xf32, #tpu.memory_space<vmem>>, vector<32x32xf32>
    %c0_4 = arith.constant 0 : index
    %c0_5 = arith.constant 0 : index
    %5 = vector.load %arg6[%c0_4, %c0_5] : memref<32x128xf32, #tpu.memory_space<vmem>>, vector<32x128xf32>
    %c0_6 = arith.constant 0 : index
    %c0_7 = arith.constant 0 : index
    %6 = vector.load %arg7[%c0_6, %c0_7] : memref<1x128xf32, #tpu.memory_space<vmem>>, vector<1x128xf32>
    %c0_8 = arith.constant 0 : index
    %c0_9 = arith.constant 0 : index
    %7 = vector.load %arg10[%c0_8, %c0_9] : memref<2x32xf32, #tpu.memory_space<vmem>>, vector<2x32xf32>
    %c0_i32_10 = arith.constant 0 : i32
    %cst = arith.constant dense<0.000000e+00> : vector<2x64xf32>
    %8 = tpu.matmul %7, %3, %cst {dimension_numbers = #tpu.dot_dimension_numbers<[1], [0], [0], [1], [0, 0, 1, 1], [], []>} : vector<2x32xf32>, vector<32x64xf32>, vector<2x64xf32> -> vector<2x64xf32>
    %9 = arith.index_cast %c0_i32_10 : i32 to index
    %c0_11 = arith.constant 0 : index
    %c0_12 = arith.constant 0 : index
    %10 = vector.load %arg2[%9, %c0_11, %c0_12] : memref<8x2x64xf32, #tpu.memory_space<vmem>>, vector<1x2x64xf32>
    %11 = vector.shape_cast %10 : vector<1x2x64xf32> to vector<2x64xf32>
    %12 = arith.addf %8, %11 : vector<2x64xf32>
    %13 = arith.negf %12 : vector<2x64xf32>
    %14 = math.exp %13 : vector<2x64xf32>
    %cst_13 = arith.constant 1.000000e+00 : f32
    %15 = vector.broadcast %cst_13 : f32 to vector<2x64xf32>
    %16 = arith.addf %15, %14 : vector<2x64xf32>
    %17 = arith.divf %15, %16 : vector<2x64xf32>
    %18 = vector.extract_strided_slice %17 {offsets = [0, 0], sizes = [2, 32], strides = [1, 1]} : vector<2x64xf32> to vector<2x32xf32>
    %19 = vector.extract_strided_slice %17 {offsets = [0, 32], sizes = [2, 32], strides = [1, 1]} : vector<2x64xf32> to vector<2x32xf32>
    %20 = arith.mulf %19, %7 : vector<2x32xf32>
    %cst_14 = arith.constant dense<0.000000e+00> : vector<2x32xf32>
    %21 = tpu.matmul %20, %4, %cst_14 {dimension_numbers = #tpu.dot_dimension_numbers<[1], [0], [0], [1], [0, 0, 1, 1], [], []>} : vector<2x32xf32>, vector<32x32xf32>, vector<2x32xf32> -> vector<2x32xf32>
    %22 = arith.index_cast %c0_i32_10 : i32 to index
    %c0_15 = arith.constant 0 : index
    %c0_16 = arith.constant 0 : index
    %23 = vector.load %arg3[%22, %c0_15, %c0_16] : memref<8x2x32xf32, #tpu.memory_space<vmem>>, vector<1x2x32xf32>
    %24 = vector.shape_cast %23 : vector<1x2x32xf32> to vector<2x32xf32>
    %25 = arith.addf %21, %24 : vector<2x32xf32>
    %26 = math.tanh %25 : vector<2x32xf32>
    %cst_17 = arith.constant 1.000000e+00 : f32
    %27 = vector.broadcast %cst_17 : f32 to vector<2x32xf32>
    %28 = arith.subf %27, %18 : vector<2x32xf32>
    %29 = arith.mulf %28, %7 : vector<2x32xf32>
    %30 = arith.mulf %18, %26 : vector<2x32xf32>
    %31 = arith.addf %29, %30 : vector<2x32xf32>
    %cst_18 = arith.constant dense<0.000000e+00> : vector<2x128xf32>
    %32 = tpu.matmul %31, %5, %cst_18 {dimension_numbers = #tpu.dot_dimension_numbers<[1], [0], [0], [1], [0, 0, 1, 1], [], []>} : vector<2x32xf32>, vector<32x128xf32>, vector<2x128xf32> -> vector<2x128xf32>
    %33 = vector.broadcast %6 : vector<1x128xf32> to vector<2x128xf32>
    %34 = arith.addf %32, %33 : vector<2x128xf32>
    %cst_19 = arith.constant dense<0xFF800000> : vector<2xf32>
    %35 = vector.multi_reduction <maximumf>, %34, %cst_19 [1] : vector<2x128xf32> to vector<2xf32>
    %36 = vector.shape_cast %35 : vector<2xf32> to vector<2x1xf32>
    %37 = vector.broadcast %36 : vector<2x1xf32> to vector<2x128xf32>
    %38 = arith.subf %34, %37 : vector<2x128xf32>
    %39 = math.exp %38 : vector<2x128xf32>
    %cst_20 = arith.constant dense<0.000000e+00> : vector<2xf32>
    %40 = vector.multi_reduction <add>, %39, %cst_20 [1] : vector<2x128xf32> to vector<2xf32>
    %41 = vector.shape_cast %40 : vector<2xf32> to vector<2x1xf32>
    %42 = tpu.reciprocal %41 {approx = true} : vector<2x1xf32> -> vector<2x1xf32>
    %43 = vector.broadcast %42 : vector<2x1xf32> to vector<2x128xf32>
    %44 = arith.mulf %39, %43 : vector<2x128xf32>
    %45 = arith.index_cast %c0_i32_10 : i32 to index
    %c0_21 = arith.constant 0 : index
    %c0_22 = arith.constant 0 : index
    %46 = vector.load %arg9[%45, %c0_21, %c0_22] : memref<8x2x128xf32, #tpu.memory_space<vmem>>, vector<1x2x128xf32>
    %47 = vector.shape_cast %46 : vector<1x2x128xf32> to vector<2x128xf32>
    %48 = vector.shape_cast %44 : vector<2x128xf32> to vector<1x2x128xf32>
    tpu.vector_store %arg9[%45, %c0_21, %c0_22], %48 {strides = array<i32>} : memref<8x2x128xf32, #tpu.memory_space<vmem>>, vector<1x2x128xf32>,
    %c1_i32 = arith.constant 1 : i32
    %cst_23 = arith.constant dense<0.000000e+00> : vector<2x64xf32>
    %49 = tpu.matmul %31, %3, %cst_23 {dimension_numbers = #tpu.dot_dimension_numbers<[1], [0], [0], [1], [0, 0, 1, 1], [], []>} : vector<2x32xf32>, vector<32x64xf32>, vector<2x64xf32> -> vector<2x64xf32>
    %50 = arith.index_cast %c1_i32 : i32 to index
    %c0_24 = arith.constant 0 : index
    %c0_25 = arith.constant 0 : index
    %51 = vector.load %arg2[%50, %c0_24, %c0_25] : memref<8x2x64xf32, #tpu.memory_space<vmem>>, vector<1x2x64xf32>
    %52 = vector.shape_cast %51 : vector<1x2x64xf32> to vector<2x64xf32>
    %53 = arith.addf %49, %52 : vector<2x64xf32>
    %54 = arith.negf %53 : vector<2x64xf32>
    %55 = math.exp %54 : vector<2x64xf32>
    %cst_26 = arith.constant 1.000000e+00 : f32
    %56 = vector.broadcast %cst_26 : f32 to vector<2x64xf32>
    %57 = arith.addf %56, %55 : vector<2x64xf32>
    %58 = arith.divf %56, %57 : vector<2x64xf32>
    %59 = vector.extract_strided_slice %58 {offsets = [0, 0], sizes = [2, 32], strides = [1, 1]} : vector<2x64xf32> to vector<2x32xf32>
    %60 = vector.extract_strided_slice %58 {offsets = [0, 32], sizes = [2, 32], strides = [1, 1]} : vector<2x64xf32> to vector<2x32xf32>
    %61 = arith.mulf %60, %31 : vector<2x32xf32>
    %cst_27 = arith.constant dense<0.000000e+00> : vector<2x32xf32>
    %62 = tpu.matmul %61, %4, %cst_27 {dimension_numbers = #tpu.dot_dimension_numbers<[1], [0], [0], [1], [0, 0, 1, 1], [], []>} : vector<2x32xf32>, vector<32x32xf32>, vector<2x32xf32> -> vector<2x32xf32>
    %63 = arith.index_cast %c1_i32 : i32 to index
    %c0_28 = arith.constant 0 : index
    %c0_29 = arith.constant 0 : index
    %64 = vector.load %arg3[%63, %c0_28, %c0_29] : memref<8x2x32xf32, #tpu.memory_space<vmem>>, vector<1x2x32xf32>
    %65 = vector.shape_cast %64 : vector<1x2x32xf32> to vector<2x32xf32>
    %66 = arith.addf %62, %65 : vector<2x32xf32>
    %67 = math.tanh %66 : vector<2x32xf32>
    %cst_30 = arith.constant 1.000000e+00 : f32
    %68 = vector.broadcast %cst_30 : f32 to vector<2x32xf32>
    %69 = arith.subf %68, %59 : vector<2x32xf32>
    %70 = arith.mulf %69, %31 : vector<2x32xf32>
    %71 = arith.mulf %59, %67 : vector<2x32xf32>
    %72 = arith.addf %70, %71 : vector<2x32xf32>
    %cst_31 = arith.constant dense<0.000000e+00> : vector<2x128xf32>
    %73 = tpu.matmul %72, %5, %cst_31 {dimension_numbers = #tpu.dot_dimension_numbers<[1], [0], [0], [1], [0, 0, 1, 1], [], []>} : vector<2x32xf32>, vector<32x128xf32>, vector<2x128xf32> -> vector<2x128xf32>
    %74 = vector.broadcast %6 : vector<1x128xf32> to vector<2x128xf32>
    %75 = arith.addf %73, %74 : vector<2x128xf32>
    %cst_32 = arith.constant dense<0xFF800000> : vector<2xf32>
    %76 = vector.multi_reduction <maximumf>, %75, %cst_32 [1] : vector<2x128xf32> to vector<2xf32>
    %77 = vector.shape_cast %76 : vector<2xf32> to vector<2x1xf32>
    %78 = vector.broadcast %77 : vector<2x1xf32> to vector<2x128xf32>
    %79 = arith.subf %75, %78 : vector<2x128xf32>
    %80 = math.exp %79 : vector<2x128xf32>
    %cst_33 = arith.constant dense<0.000000e+00> : vector<2xf32>
    %81 = vector.multi_reduction <add>, %80, %cst_33 [1] : vector<2x128xf32> to vector<2xf32>
    %82 = vector.shape_cast %81 : vector<2xf32> to vector<2x1xf32>
    %83 = tpu.reciprocal %82 {approx = true} : vector<2x1xf32> -> vector<2x1xf32>
    %84 = vector.broadcast %83 : vector<2x1xf32> to vector<2x128xf32>
    %85 = arith.mulf %80, %84 : vector<2x128xf32>
    %86 = arith.index_cast %c1_i32 : i32 to index
    %c0_34 = arith.constant 0 : index
    %c0_35 = arith.constant 0 : index
    %87 = vector.load %arg9[%86, %c0_34, %c0_35] : memref<8x2x128xf32, #tpu.memory_space<vmem>>, vector<1x2x128xf32>
    %88 = vector.shape_cast %87 : vector<1x2x128xf32> to vector<2x128xf32>
    %89 = vector.shape_cast %85 : vector<2x128xf32> to vector<1x2x128xf32>
    tpu.vector_store %arg9[%86, %c0_34, %c0_35], %89 {strides = array<i32>} : memref<8x2x128xf32, #tpu.memory_space<vmem>>, vector<1x2x128xf32>,
    %c2_i32 = arith.constant 2 : i32
    %cst_36 = arith.constant dense<0.000000e+00> : vector<2x64xf32>
    %90 = tpu.matmul %72, %3, %cst_36 {dimension_numbers = #tpu.dot_dimension_numbers<[1], [0], [0], [1], [0, 0, 1, 1], [], []>} : vector<2x32xf32>, vector<32x64xf32>, vector<2x64xf32> -> vector<2x64xf32>
    %91 = arith.index_cast %c2_i32 : i32 to index
    %c0_37 = arith.constant 0 : index
    %c0_38 = arith.constant 0 : index
    %92 = vector.load %arg2[%91, %c0_37, %c0_38] : memref<8x2x64xf32, #tpu.memory_space<vmem>>, vector<1x2x64xf32>
    %93 = vector.shape_cast %92 : vector<1x2x64xf32> to vector<2x64xf32>
    %94 = arith.addf %90, %93 : vector<2x64xf32>
    %95 = arith.negf %94 : vector<2x64xf32>
    %96 = math.exp %95 : vector<2x64xf32>
    %cst_39 = arith.constant 1.000000e+00 : f32
    %97 = vector.broadcast %cst_39 : f32 to vector<2x64xf32>
    %98 = arith.addf %97, %96 : vector<2x64xf32>
    %99 = arith.divf %97, %98 : vector<2x64xf32>
    %100 = vector.extract_strided_slice %99 {offsets = [0, 0], sizes = [2, 32], strides = [1, 1]} : vector<2x64xf32> to vector<2x32xf32>
    %101 = vector.extract_strided_slice %99 {offsets = [0, 32], sizes = [2, 32], strides = [1, 1]} : vector<2x64xf32> to vector<2x32xf32>
    %102 = arith.mulf %101, %72 : vector<2x32xf32>
    %cst_40 = arith.constant dense<0.000000e+00> : vector<2x32xf32>
    %103 = tpu.matmul %102, %4, %cst_40 {dimension_numbers = #tpu.dot_dimension_numbers<[1], [0], [0], [1], [0, 0, 1, 1], [], []>} : vector<2x32xf32>, vector<32x32xf32>, vector<2x32xf32> -> vector<2x32xf32>
    %104 = arith.index_cast %c2_i32 : i32 to index
    %c0_41 = arith.constant 0 : index
    %c0_42 = arith.constant 0 : index
    %105 = vector.load %arg3[%104, %c0_41, %c0_42] : memref<8x2x32xf32, #tpu.memory_space<vmem>>, vector<1x2x32xf32>
    %106 = vector.shape_cast %105 : vector<1x2x32xf32> to vector<2x32xf32>
    %107 = arith.addf %103, %106 : vector<2x32xf32>
    %108 = math.tanh %107 : vector<2x32xf32>
    %cst_43 = arith.constant 1.000000e+00 : f32
    %109 = vector.broadcast %cst_43 : f32 to vector<2x32xf32>
    %110 = arith.subf %109, %100 : vector<2x32xf32>
    %111 = arith.mulf %110, %72 : vector<2x32xf32>
    %112 = arith.mulf %100, %108 : vector<2x32xf32>
    %113 = arith.addf %111, %112 : vector<2x32xf32>
    %cst_44 = arith.constant dense<0.000000e+00> : vector<2x128xf32>
    %114 = tpu.matmul %113, %5, %cst_44 {dimension_numbers = #tpu.dot_dimension_numbers<[1], [0], [0], [1], [0, 0, 1, 1], [], []>} : vector<2x32xf32>, vector<32x128xf32>, vector<2x128xf32> -> vector<2x128xf32>
    %115 = vector.broadcast %6 : vector<1x128xf32> to vector<2x128xf32>
    %116 = arith.addf %114, %115 : vector<2x128xf32>
    %cst_45 = arith.constant dense<0xFF800000> : vector<2xf32>
    %117 = vector.multi_reduction <maximumf>, %116, %cst_45 [1] : vector<2x128xf32> to vector<2xf32>
    %118 = vector.shape_cast %117 : vector<2xf32> to vector<2x1xf32>
    %119 = vector.broadcast %118 : vector<2x1xf32> to vector<2x128xf32>
    %120 = arith.subf %116, %119 : vector<2x128xf32>
    %121 = math.exp %120 : vector<2x128xf32>
    %cst_46 = arith.constant dense<0.000000e+00> : vector<2xf32>
    %122 = vector.multi_reduction <add>, %121, %cst_46 [1] : vector<2x128xf32> to vector<2xf32>
    %123 = vector.shape_cast %122 : vector<2xf32> to vector<2x1xf32>
    %124 = tpu.reciprocal %123 {approx = true} : vector<2x1xf32> -> vector<2x1xf32>
    %125 = vector.broadcast %124 : vector<2x1xf32> to vector<2x128xf32>
    %126 = arith.mulf %121, %125 : vector<2x128xf32>
    %127 = arith.index_cast %c2_i32 : i32 to index
    %c0_47 = arith.constant 0 : index
    %c0_48 = arith.constant 0 : index
    %128 = vector.load %arg9[%127, %c0_47, %c0_48] : memref<8x2x128xf32, #tpu.memory_space<vmem>>, vector<1x2x128xf32>
    %129 = vector.shape_cast %128 : vector<1x2x128xf32> to vector<2x128xf32>
    %130 = vector.shape_cast %126 : vector<2x128xf32> to vector<1x2x128xf32>
    tpu.vector_store %arg9[%127, %c0_47, %c0_48], %130 {strides = array<i32>} : memref<8x2x128xf32, #tpu.memory_space<vmem>>, vector<1x2x128xf32>,
    %c3_i32 = arith.constant 3 : i32
    %cst_49 = arith.constant dense<0.000000e+00> : vector<2x64xf32>
    %131 = tpu.matmul %113, %3, %cst_49 {dimension_numbers = #tpu.dot_dimension_numbers<[1], [0], [0], [1], [0, 0, 1, 1], [], []>} : vector<2x32xf32>, vector<32x64xf32>, vector<2x64xf32> -> vector<2x64xf32>
    %132 = arith.index_cast %c3_i32 : i32 to index
    %c0_50 = arith.constant 0 : index
    %c0_51 = arith.constant 0 : index
    %133 = vector.load %arg2[%132, %c0_50, %c0_51] : memref<8x2x64xf32, #tpu.memory_space<vmem>>, vector<1x2x64xf32>
    %134 = vector.shape_cast %133 : vector<1x2x64xf32> to vector<2x64xf32>
    %135 = arith.addf %131, %134 : vector<2x64xf32>
    %136 = arith.negf %135 : vector<2x64xf32>
    %137 = math.exp %136 : vector<2x64xf32>
    %cst_52 = arith.constant 1.000000e+00 : f32
    %138 = vector.broadcast %cst_52 : f32 to vector<2x64xf32>
    %139 = arith.addf %138, %137 : vector<2x64xf32>
    %140 = arith.divf %138, %139 : vector<2x64xf32>
    %141 = vector.extract_strided_slice %140 {offsets = [0, 0], sizes = [2, 32], strides = [1, 1]} : vector<2x64xf32> to vector<2x32xf32>
    %142 = vector.extract_strided_slice %140 {offsets = [0, 32], sizes = [2, 32], strides = [1, 1]} : vector<2x64xf32> to vector<2x32xf32>
    %143 = arith.mulf %142, %113 : vector<2x32xf32>
    %cst_53 = arith.constant dense<0.000000e+00> : vector<2x32xf32>
    %144 = tpu.matmul %143, %4, %cst_53 {dimension_numbers = #tpu.dot_dimension_numbers<[1], [0], [0], [1], [0, 0, 1, 1], [], []>} : vector<2x32xf32>, vector<32x32xf32>, vector<2x32xf32> -> vector<2x32xf32>
    %145 = arith.index_cast %c3_i32 : i32 to index
    %c0_54 = arith.constant 0 : index
    %c0_55 = arith.constant 0 : index
    %146 = vector.load %arg3[%145, %c0_54, %c0_55] : memref<8x2x32xf32, #tpu.memory_space<vmem>>, vector<1x2x32xf32>
    %147 = vector.shape_cast %146 : vector<1x2x32xf32> to vector<2x32xf32>
    %148 = arith.addf %144, %147 : vector<2x32xf32>
    %149 = math.tanh %148 : vector<2x32xf32>
    %cst_56 = arith.constant 1.000000e+00 : f32
    %150 = vector.broadcast %cst_56 : f32 to vector<2x32xf32>
    %151 = arith.subf %150, %141 : vector<2x32xf32>
    %152 = arith.mulf %151, %113 : vector<2x32xf32>
    %153 = arith.mulf %141, %149 : vector<2x32xf32>
    %154 = arith.addf %152, %153 : vector<2x32xf32>
    %cst_57 = arith.constant dense<0.000000e+00> : vector<2x128xf32>
    %155 = tpu.matmul %154, %5, %cst_57 {dimension_numbers = #tpu.dot_dimension_numbers<[1], [0], [0], [1], [0, 0, 1, 1], [], []>} : vector<2x32xf32>, vector<32x128xf32>, vector<2x128xf32> -> vector<2x128xf32>
    %156 = vector.broadcast %6 : vector<1x128xf32> to vector<2x128xf32>
    %157 = arith.addf %155, %156 : vector<2x128xf32>
    %cst_58 = arith.constant dense<0xFF800000> : vector<2xf32>
    %158 = vector.multi_reduction <maximumf>, %157, %cst_58 [1] : vector<2x128xf32> to vector<2xf32>
    %159 = vector.shape_cast %158 : vector<2xf32> to vector<2x1xf32>
    %160 = vector.broadcast %159 : vector<2x1xf32> to vector<2x128xf32>
    %161 = arith.subf %157, %160 : vector<2x128xf32>
    %162 = math.exp %161 : vector<2x128xf32>
    %cst_59 = arith.constant dense<0.000000e+00> : vector<2xf32>
    %163 = vector.multi_reduction <add>, %162, %cst_59 [1] : vector<2x128xf32> to vector<2xf32>
    %164 = vector.shape_cast %163 : vector<2xf32> to vector<2x1xf32>
    %165 = tpu.reciprocal %164 {approx = true} : vector<2x1xf32> -> vector<2x1xf32>
    %166 = vector.broadcast %165 : vector<2x1xf32> to vector<2x128xf32>
    %167 = arith.mulf %162, %166 : vector<2x128xf32>
    %168 = arith.index_cast %c3_i32 : i32 to index
    %c0_60 = arith.constant 0 : index
    %c0_61 = arith.constant 0 : index
    %169 = vector.load %arg9[%168, %c0_60, %c0_61] : memref<8x2x128xf32, #tpu.memory_space<vmem>>, vector<1x2x128xf32>
    %170 = vector.shape_cast %169 : vector<1x2x128xf32> to vector<2x128xf32>
    %171 = vector.shape_cast %167 : vector<2x128xf32> to vector<1x2x128xf32>
    tpu.vector_store %arg9[%168, %c0_60, %c0_61], %171 {strides = array<i32>} : memref<8x2x128xf32, #tpu.memory_space<vmem>>, vector<1x2x128xf32>,
    %c4_i32 = arith.constant 4 : i32
    %cst_62 = arith.constant dense<0.000000e+00> : vector<2x64xf32>
    %172 = tpu.matmul %154, %3, %cst_62 {dimension_numbers = #tpu.dot_dimension_numbers<[1], [0], [0], [1], [0, 0, 1, 1], [], []>} : vector<2x32xf32>, vector<32x64xf32>, vector<2x64xf32> -> vector<2x64xf32>
    %173 = arith.index_cast %c4_i32 : i32 to index
    %c0_63 = arith.constant 0 : index
    %c0_64 = arith.constant 0 : index
    %174 = vector.load %arg2[%173, %c0_63, %c0_64] : memref<8x2x64xf32, #tpu.memory_space<vmem>>, vector<1x2x64xf32>
    %175 = vector.shape_cast %174 : vector<1x2x64xf32> to vector<2x64xf32>
    %176 = arith.addf %172, %175 : vector<2x64xf32>
    %177 = arith.negf %176 : vector<2x64xf32>
    %178 = math.exp %177 : vector<2x64xf32>
    %cst_65 = arith.constant 1.000000e+00 : f32
    %179 = vector.broadcast %cst_65 : f32 to vector<2x64xf32>
    %180 = arith.addf %179, %178 : vector<2x64xf32>
    %181 = arith.divf %179, %180 : vector<2x64xf32>
    %182 = vector.extract_strided_slice %181 {offsets = [0, 0], sizes = [2, 32], strides = [1, 1]} : vector<2x64xf32> to vector<2x32xf32>
    %183 = vector.extract_strided_slice %181 {offsets = [0, 32], sizes = [2, 32], strides = [1, 1]} : vector<2x64xf32> to vector<2x32xf32>
    %184 = arith.mulf %183, %154 : vector<2x32xf32>
    %cst_66 = arith.constant dense<0.000000e+00> : vector<2x32xf32>
    %185 = tpu.matmul %184, %4, %cst_66 {dimension_numbers = #tpu.dot_dimension_numbers<[1], [0], [0], [1], [0, 0, 1, 1], [], []>} : vector<2x32xf32>, vector<32x32xf32>, vector<2x32xf32> -> vector<2x32xf32>
    %186 = arith.index_cast %c4_i32 : i32 to index
    %c0_67 = arith.constant 0 : index
    %c0_68 = arith.constant 0 : index
    %187 = vector.load %arg3[%186, %c0_67, %c0_68] : memref<8x2x32xf32, #tpu.memory_space<vmem>>, vector<1x2x32xf32>
    %188 = vector.shape_cast %187 : vector<1x2x32xf32> to vector<2x32xf32>
    %189 = arith.addf %185, %188 : vector<2x32xf32>
    %190 = math.tanh %189 : vector<2x32xf32>
    %cst_69 = arith.constant 1.000000e+00 : f32
    %191 = vector.broadcast %cst_69 : f32 to vector<2x32xf32>
    %192 = arith.subf %191, %182 : vector<2x32xf32>
    %193 = arith.mulf %192, %154 : vector<2x32xf32>
    %194 = arith.mulf %182, %190 : vector<2x32xf32>
    %195 = arith.addf %193, %194 : vector<2x32xf32>
    %cst_70 = arith.constant dense<0.000000e+00> : vector<2x128xf32>
    %196 = tpu.matmul %195, %5, %cst_70 {dimension_numbers = #tpu.dot_dimension_numbers<[1], [0], [0], [1], [0, 0, 1, 1], [], []>} : vector<2x32xf32>, vector<32x128xf32>, vector<2x128xf32> -> vector<2x128xf32>
    %197 = vector.broadcast %6 : vector<1x128xf32> to vector<2x128xf32>
    %198 = arith.addf %196, %197 : vector<2x128xf32>
    %cst_71 = arith.constant dense<0xFF800000> : vector<2xf32>
    %199 = vector.multi_reduction <maximumf>, %198, %cst_71 [1] : vector<2x128xf32> to vector<2xf32>
    %200 = vector.shape_cast %199 : vector<2xf32> to vector<2x1xf32>
    %201 = vector.broadcast %200 : vector<2x1xf32> to vector<2x128xf32>
    %202 = arith.subf %198, %201 : vector<2x128xf32>
    %203 = math.exp %202 : vector<2x128xf32>
    %cst_72 = arith.constant dense<0.000000e+00> : vector<2xf32>
    %204 = vector.multi_reduction <add>, %203, %cst_72 [1] : vector<2x128xf32> to vector<2xf32>
    %205 = vector.shape_cast %204 : vector<2xf32> to vector<2x1xf32>
    %206 = tpu.reciprocal %205 {approx = true} : vector<2x1xf32> -> vector<2x1xf32>
    %207 = vector.broadcast %206 : vector<2x1xf32> to vector<2x128xf32>
    %208 = arith.mulf %203, %207 : vector<2x128xf32>
    %209 = arith.index_cast %c4_i32 : i32 to index
    %c0_73 = arith.constant 0 : index
    %c0_74 = arith.constant 0 : index
    %210 = vector.load %arg9[%209, %c0_73, %c0_74] : memref<8x2x128xf32, #tpu.memory_space<vmem>>, vector<1x2x128xf32>
    %211 = vector.shape_cast %210 : vector<1x2x128xf32> to vector<2x128xf32>
    %212 = vector.shape_cast %208 : vector<2x128xf32> to vector<1x2x128xf32>
    tpu.vector_store %arg9[%209, %c0_73, %c0_74], %212 {strides = array<i32>} : memref<8x2x128xf32, #tpu.memory_space<vmem>>, vector<1x2x128xf32>,
    %c5_i32 = arith.constant 5 : i32
    %cst_75 = arith.constant dense<0.000000e+00> : vector<2x64xf32>
    %213 = tpu.matmul %195, %3, %cst_75 {dimension_numbers = #tpu.dot_dimension_numbers<[1], [0], [0], [1], [0, 0, 1, 1], [], []>} : vector<2x32xf32>, vector<32x64xf32>, vector<2x64xf32> -> vector<2x64xf32>
    %214 = arith.index_cast %c5_i32 : i32 to index
    %c0_76 = arith.constant 0 : index
    %c0_77 = arith.constant 0 : index
    %215 = vector.load %arg2[%214, %c0_76, %c0_77] : memref<8x2x64xf32, #tpu.memory_space<vmem>>, vector<1x2x64xf32>
    %216 = vector.shape_cast %215 : vector<1x2x64xf32> to vector<2x64xf32>
    %217 = arith.addf %213, %216 : vector<2x64xf32>
    %218 = arith.negf %217 : vector<2x64xf32>
    %219 = math.exp %218 : vector<2x64xf32>
    %cst_78 = arith.constant 1.000000e+00 : f32
    %220 = vector.broadcast %cst_78 : f32 to vector<2x64xf32>
    %221 = arith.addf %220, %219 : vector<2x64xf32>
    %222 = arith.divf %220, %221 : vector<2x64xf32>
    %223 = vector.extract_strided_slice %222 {offsets = [0, 0], sizes = [2, 32], strides = [1, 1]} : vector<2x64xf32> to vector<2x32xf32>
    %224 = vector.extract_strided_slice %222 {offsets = [0, 32], sizes = [2, 32], strides = [1, 1]} : vector<2x64xf32> to vector<2x32xf32>
    %225 = arith.mulf %224, %195 : vector<2x32xf32>
    %cst_79 = arith.constant dense<0.000000e+00> : vector<2x32xf32>
    %226 = tpu.matmul %225, %4, %cst_79 {dimension_numbers = #tpu.dot_dimension_numbers<[1], [0], [0], [1], [0, 0, 1, 1], [], []>} : vector<2x32xf32>, vector<32x32xf32>, vector<2x32xf32> -> vector<2x32xf32>
    %227 = arith.index_cast %c5_i32 : i32 to index
    %c0_80 = arith.constant 0 : index
    %c0_81 = arith.constant 0 : index
    %228 = vector.load %arg3[%227, %c0_80, %c0_81] : memref<8x2x32xf32, #tpu.memory_space<vmem>>, vector<1x2x32xf32>
    %229 = vector.shape_cast %228 : vector<1x2x32xf32> to vector<2x32xf32>
    %230 = arith.addf %226, %229 : vector<2x32xf32>
    %231 = math.tanh %230 : vector<2x32xf32>
    %cst_82 = arith.constant 1.000000e+00 : f32
    %232 = vector.broadcast %cst_82 : f32 to vector<2x32xf32>
    %233 = arith.subf %232, %223 : vector<2x32xf32>
    %234 = arith.mulf %233, %195 : vector<2x32xf32>
    %235 = arith.mulf %223, %231 : vector<2x32xf32>
    %236 = arith.addf %234, %235 : vector<2x32xf32>
    %cst_83 = arith.constant dense<0.000000e+00> : vector<2x128xf32>
    %237 = tpu.matmul %236, %5, %cst_83 {dimension_numbers = #tpu.dot_dimension_numbers<[1], [0], [0], [1], [0, 0, 1, 1], [], []>} : vector<2x32xf32>, vector<32x128xf32>, vector<2x128xf32> -> vector<2x128xf32>
    %238 = vector.broadcast %6 : vector<1x128xf32> to vector<2x128xf32>
    %239 = arith.addf %237, %238 : vector<2x128xf32>
    %cst_84 = arith.constant dense<0xFF800000> : vector<2xf32>
    %240 = vector.multi_reduction <maximumf>, %239, %cst_84 [1] : vector<2x128xf32> to vector<2xf32>
    %241 = vector.shape_cast %240 : vector<2xf32> to vector<2x1xf32>
    %242 = vector.broadcast %241 : vector<2x1xf32> to vector<2x128xf32>
    %243 = arith.subf %239, %242 : vector<2x128xf32>
    %244 = math.exp %243 : vector<2x128xf32>
    %cst_85 = arith.constant dense<0.000000e+00> : vector<2xf32>
    %245 = vector.multi_reduction <add>, %244, %cst_85 [1] : vector<2x128xf32> to vector<2xf32>
    %246 = vector.shape_cast %245 : vector<2xf32> to vector<2x1xf32>
    %247 = tpu.reciprocal %246 {approx = true} : vector<2x1xf32> -> vector<2x1xf32>
    %248 = vector.broadcast %247 : vector<2x1xf32> to vector<2x128xf32>
    %249 = arith.mulf %244, %248 : vector<2x128xf32>
    %250 = arith.index_cast %c5_i32 : i32 to index
    %c0_86 = arith.constant 0 : index
    %c0_87 = arith.constant 0 : index
    %251 = vector.load %arg9[%250, %c0_86, %c0_87] : memref<8x2x128xf32, #tpu.memory_space<vmem>>, vector<1x2x128xf32>
    %252 = vector.shape_cast %251 : vector<1x2x128xf32> to vector<2x128xf32>
    %253 = vector.shape_cast %249 : vector<2x128xf32> to vector<1x2x128xf32>
    tpu.vector_store %arg9[%250, %c0_86, %c0_87], %253 {strides = array<i32>} : memref<8x2x128xf32, #tpu.memory_space<vmem>>, vector<1x2x128xf32>,
    %c6_i32 = arith.constant 6 : i32
    %cst_88 = arith.constant dense<0.000000e+00> : vector<2x64xf32>
    %254 = tpu.matmul %236, %3, %cst_88 {dimension_numbers = #tpu.dot_dimension_numbers<[1], [0], [0], [1], [0, 0, 1, 1], [], []>} : vector<2x32xf32>, vector<32x64xf32>, vector<2x64xf32> -> vector<2x64xf32>
    %255 = arith.index_cast %c6_i32 : i32 to index
    %c0_89 = arith.constant 0 : index
    %c0_90 = arith.constant 0 : index
    %256 = vector.load %arg2[%255, %c0_89, %c0_90] : memref<8x2x64xf32, #tpu.memory_space<vmem>>, vector<1x2x64xf32>
    %257 = vector.shape_cast %256 : vector<1x2x64xf32> to vector<2x64xf32>
    %258 = arith.addf %254, %257 : vector<2x64xf32>
    %259 = arith.negf %258 : vector<2x64xf32>
    %260 = math.exp %259 : vector<2x64xf32>
    %cst_91 = arith.constant 1.000000e+00 : f32
    %261 = vector.broadcast %cst_91 : f32 to vector<2x64xf32>
    %262 = arith.addf %261, %260 : vector<2x64xf32>
    %263 = arith.divf %261, %262 : vector<2x64xf32>
    %264 = vector.extract_strided_slice %263 {offsets = [0, 0], sizes = [2, 32], strides = [1, 1]} : vector<2x64xf32> to vector<2x32xf32>
    %265 = vector.extract_strided_slice %263 {offsets = [0, 32], sizes = [2, 32], strides = [1, 1]} : vector<2x64xf32> to vector<2x32xf32>
    %266 = arith.mulf %265, %236 : vector<2x32xf32>
    %cst_92 = arith.constant dense<0.000000e+00> : vector<2x32xf32>
    %267 = tpu.matmul %266, %4, %cst_92 {dimension_numbers = #tpu.dot_dimension_numbers<[1], [0], [0], [1], [0, 0, 1, 1], [], []>} : vector<2x32xf32>, vector<32x32xf32>, vector<2x32xf32> -> vector<2x32xf32>
    %268 = arith.index_cast %c6_i32 : i32 to index
    %c0_93 = arith.constant 0 : index
    %c0_94 = arith.constant 0 : index
    %269 = vector.load %arg3[%268, %c0_93, %c0_94] : memref<8x2x32xf32, #tpu.memory_space<vmem>>, vector<1x2x32xf32>
    %270 = vector.shape_cast %269 : vector<1x2x32xf32> to vector<2x32xf32>
    %271 = arith.addf %267, %270 : vector<2x32xf32>
    %272 = math.tanh %271 : vector<2x32xf32>
    %cst_95 = arith.constant 1.000000e+00 : f32
    %273 = vector.broadcast %cst_95 : f32 to vector<2x32xf32>
    %274 = arith.subf %273, %264 : vector<2x32xf32>
    %275 = arith.mulf %274, %236 : vector<2x32xf32>
    %276 = arith.mulf %264, %272 : vector<2x32xf32>
    %277 = arith.addf %275, %276 : vector<2x32xf32>
    %cst_96 = arith.constant dense<0.000000e+00> : vector<2x128xf32>
    %278 = tpu.matmul %277, %5, %cst_96 {dimension_numbers = #tpu.dot_dimension_numbers<[1], [0], [0], [1], [0, 0, 1, 1], [], []>} : vector<2x32xf32>, vector<32x128xf32>, vector<2x128xf32> -> vector<2x128xf32>
    %279 = vector.broadcast %6 : vector<1x128xf32> to vector<2x128xf32>
    %280 = arith.addf %278, %279 : vector<2x128xf32>
    %cst_97 = arith.constant dense<0xFF800000> : vector<2xf32>
    %281 = vector.multi_reduction <maximumf>, %280, %cst_97 [1] : vector<2x128xf32> to vector<2xf32>
    %282 = vector.shape_cast %281 : vector<2xf32> to vector<2x1xf32>
    %283 = vector.broadcast %282 : vector<2x1xf32> to vector<2x128xf32>
    %284 = arith.subf %280, %283 : vector<2x128xf32>
    %285 = math.exp %284 : vector<2x128xf32>
    %cst_98 = arith.constant dense<0.000000e+00> : vector<2xf32>
    %286 = vector.multi_reduction <add>, %285, %cst_98 [1] : vector<2x128xf32> to vector<2xf32>
    %287 = vector.shape_cast %286 : vector<2xf32> to vector<2x1xf32>
    %288 = tpu.reciprocal %287 {approx = true} : vector<2x1xf32> -> vector<2x1xf32>
    %289 = vector.broadcast %288 : vector<2x1xf32> to vector<2x128xf32>
    %290 = arith.mulf %285, %289 : vector<2x128xf32>
    %291 = arith.index_cast %c6_i32 : i32 to index
    %c0_99 = arith.constant 0 : index
    %c0_100 = arith.constant 0 : index
    %292 = vector.load %arg9[%291, %c0_99, %c0_100] : memref<8x2x128xf32, #tpu.memory_space<vmem>>, vector<1x2x128xf32>
    %293 = vector.shape_cast %292 : vector<1x2x128xf32> to vector<2x128xf32>
    %294 = vector.shape_cast %290 : vector<2x128xf32> to vector<1x2x128xf32>
    tpu.vector_store %arg9[%291, %c0_99, %c0_100], %294 {strides = array<i32>} : memref<8x2x128xf32, #tpu.memory_space<vmem>>, vector<1x2x128xf32>,
    %c7_i32 = arith.constant 7 : i32
    %cst_101 = arith.constant dense<0.000000e+00> : vector<2x64xf32>
    %295 = tpu.matmul %277, %3, %cst_101 {dimension_numbers = #tpu.dot_dimension_numbers<[1], [0], [0], [1], [0, 0, 1, 1], [], []>} : vector<2x32xf32>, vector<32x64xf32>, vector<2x64xf32> -> vector<2x64xf32>
    %296 = arith.index_cast %c7_i32 : i32 to index
    %c0_102 = arith.constant 0 : index
    %c0_103 = arith.constant 0 : index
    %297 = vector.load %arg2[%296, %c0_102, %c0_103] : memref<8x2x64xf32, #tpu.memory_space<vmem>>, vector<1x2x64xf32>
    %298 = vector.shape_cast %297 : vector<1x2x64xf32> to vector<2x64xf32>
    %299 = arith.addf %295, %298 : vector<2x64xf32>
    %300 = arith.negf %299 : vector<2x64xf32>
    %301 = math.exp %300 : vector<2x64xf32>
    %cst_104 = arith.constant 1.000000e+00 : f32
    %302 = vector.broadcast %cst_104 : f32 to vector<2x64xf32>
    %303 = arith.addf %302, %301 : vector<2x64xf32>
    %304 = arith.divf %302, %303 : vector<2x64xf32>
    %305 = vector.extract_strided_slice %304 {offsets = [0, 0], sizes = [2, 32], strides = [1, 1]} : vector<2x64xf32> to vector<2x32xf32>
    %306 = vector.extract_strided_slice %304 {offsets = [0, 32], sizes = [2, 32], strides = [1, 1]} : vector<2x64xf32> to vector<2x32xf32>
    %307 = arith.mulf %306, %277 : vector<2x32xf32>
    %cst_105 = arith.constant dense<0.000000e+00> : vector<2x32xf32>
    %308 = tpu.matmul %307, %4, %cst_105 {dimension_numbers = #tpu.dot_dimension_numbers<[1], [0], [0], [1], [0, 0, 1, 1], [], []>} : vector<2x32xf32>, vector<32x32xf32>, vector<2x32xf32> -> vector<2x32xf32>
    %309 = arith.index_cast %c7_i32 : i32 to index
    %c0_106 = arith.constant 0 : index
    %c0_107 = arith.constant 0 : index
    %310 = vector.load %arg3[%309, %c0_106, %c0_107] : memref<8x2x32xf32, #tpu.memory_space<vmem>>, vector<1x2x32xf32>
    %311 = vector.shape_cast %310 : vector<1x2x32xf32> to vector<2x32xf32>
    %312 = arith.addf %308, %311 : vector<2x32xf32>
    %313 = math.tanh %312 : vector<2x32xf32>
    %cst_108 = arith.constant 1.000000e+00 : f32
    %314 = vector.broadcast %cst_108 : f32 to vector<2x32xf32>
    %315 = arith.subf %314, %305 : vector<2x32xf32>
    %316 = arith.mulf %315, %277 : vector<2x32xf32>
    %317 = arith.mulf %305, %313 : vector<2x32xf32>
    %318 = arith.addf %316, %317 : vector<2x32xf32>
    %cst_109 = arith.constant dense<0.000000e+00> : vector<2x128xf32>
    %319 = tpu.matmul %318, %5, %cst_109 {dimension_numbers = #tpu.dot_dimension_numbers<[1], [0], [0], [1], [0, 0, 1, 1], [], []>} : vector<2x32xf32>, vector<32x128xf32>, vector<2x128xf32> -> vector<2x128xf32>
    %320 = vector.broadcast %6 : vector<1x128xf32> to vector<2x128xf32>
    %321 = arith.addf %319, %320 : vector<2x128xf32>
    %cst_110 = arith.constant dense<0xFF800000> : vector<2xf32>
    %322 = vector.multi_reduction <maximumf>, %321, %cst_110 [1] : vector<2x128xf32> to vector<2xf32>
    %323 = vector.shape_cast %322 : vector<2xf32> to vector<2x1xf32>
    %324 = vector.broadcast %323 : vector<2x1xf32> to vector<2x128xf32>
    %325 = arith.subf %321, %324 : vector<2x128xf32>
    %326 = math.exp %325 : vector<2x128xf32>
    %cst_111 = arith.constant dense<0.000000e+00> : vector<2xf32>
    %327 = vector.multi_reduction <add>, %326, %cst_111 [1] : vector<2x128xf32> to vector<2xf32>
    %328 = vector.shape_cast %327 : vector<2xf32> to vector<2x1xf32>
    %329 = tpu.reciprocal %328 {approx = true} : vector<2x1xf32> -> vector<2x1xf32>
    %330 = vector.broadcast %329 : vector<2x1xf32> to vector<2x128xf32>
    %331 = arith.mulf %326, %330 : vector<2x128xf32>
    %332 = arith.index_cast %c7_i32 : i32 to index
    %c0_112 = arith.constant 0 : index
    %c0_113 = arith.constant 0 : index
    %333 = vector.load %arg9[%332, %c0_112, %c0_113] : memref<8x2x128xf32, #tpu.memory_space<vmem>>, vector<1x2x128xf32>
    %334 = vector.shape_cast %333 : vector<1x2x128xf32> to vector<2x128xf32>
    %335 = vector.shape_cast %331 : vector<2x128xf32> to vector<1x2x128xf32>
    tpu.vector_store %arg9[%332, %c0_112, %c0_113], %335 {strides = array<i32>} : memref<8x2x128xf32, #tpu.memory_space<vmem>>, vector<1x2x128xf32>,
    %c8_i32 = arith.constant 8 : i32
    %c0_114 = arith.constant 0 : index
    %c0_115 = arith.constant 0 : index
    %336 = vector.load %arg10[%c0_114, %c0_115] : memref<2x32xf32, #tpu.memory_space<vmem>>, vector<2x32xf32>
    tpu.vector_store %arg10[%c0_114, %c0_115], %318 {strides = array<i32>} : memref<2x32xf32, #tpu.memory_space<vmem>>, vector<2x32xf32>,
    return
  }
  func.func @transform_0(%arg0: i32, %arg1: i32) -> (i32, i32, i32) {
    %c0_i32 = arith.constant 0 : i32
    %c0_i32_0 = arith.constant 0 : i32
    return %arg1, %arg0, %c0_i32 : i32, i32, i32
  }
  func.func @transform_1(%arg0: i32, %arg1: i32) -> (i32, i32, i32) {
    %c0_i32 = arith.constant 0 : i32
    %c0_i32_0 = arith.constant 0 : i32
    return %arg1, %arg0, %c0_i32 : i32, i32, i32
  }
  func.func @transform_2(%arg0: i32, %arg1: i32) -> (i32, i32) {
    %c0_i32 = arith.constant 0 : i32
    %c0_i32_0 = arith.constant 0 : i32
    %c0_i32_1 = arith.constant 0 : i32
    return %c0_i32, %c0_i32_0 : i32, i32
  }
  func.func @transform_3(%arg0: i32, %arg1: i32) -> (i32, i32) {
    %c0_i32 = arith.constant 0 : i32
    %c0_i32_0 = arith.constant 0 : i32
    %c0_i32_1 = arith.constant 0 : i32
    return %c0_i32, %c0_i32_0 : i32, i32
  }
  func.func @transform_4(%arg0: i32, %arg1: i32) -> (i32, i32) {
    %c0_i32 = arith.constant 0 : i32
    %c0_i32_0 = arith.constant 0 : i32
    %c0_i32_1 = arith.constant 0 : i32
    return %c0_i32, %c0_i32_0 : i32, i32
  }
  func.func @transform_5(%arg0: i32, %arg1: i32) -> (i32, i32) {
    %c0_i32 = arith.constant 0 : i32
    %c0_i32_0 = arith.constant 0 : i32
    %c0_i32_1 = arith.constant 0 : i32
    return %c0_i32, %c0_i32_0 : i32, i32
  }
  func.func @transform_6(%arg0: i32, %arg1: i32) -> (i32, i32) {
    %c0_i32 = arith.constant 0 : i32
    %c0_i32_0 = arith.constant 0 : i32
    %c0_i32_1 = arith.constant 0 : i32
    return %c0_i32, %c0_i32_0 : i32, i32
  }
  func.func @transform_7(%arg0: i32, %arg1: i32) -> (i32, i32, i32) {
    %c0_i32 = arith.constant 0 : i32
    %c0_i32_0 = arith.constant 0 : i32
    return %arg1, %arg0, %c0_i32 : i32, i32, i32
  }
}

</mosaic_0001>

<llo_original>
// kernel: tpu_custom_call.1
$region0: #{tpu_custom_call.1}
  #allocation0 [shape = 'u32[]', space=smem, size = 0x4, offset = 0x4, fixed_abs, tag = 'smem constant byte address 0x4 - core index']
  #allocation1 [shape = 'u32[144,128]{1,0:T(1,128)}', space=vmem, size = 0x12000, scoped, tag = 'internal scratch']
  #allocation2 [shape = 'f32[2,32]{1,0:T(2,128)}', space=vmem, size = 0x400, scoped, tag = 'scratch operand']
  %s0 = inlined_call_operand.hbm [shape: f32[8,2,64], index: 0, kind: input, shape index: {}]
  %s1 = inlined_call_operand.hbm [shape: f32[8,2,32], index: 1, kind: input, shape index: {}]
  %s2 = inlined_call_operand.hbm [shape: f32[32,64], index: 2, kind: input, shape index: {}]
  %s3 = inlined_call_operand.hbm [shape: f32[32,32], index: 3, kind: input, shape index: {}]
  %s4 = inlined_call_operand.hbm [shape: f32[32,128], index: 4, kind: input, shape index: {}]
  %s5 = inlined_call_operand.vmem [shape: f32[1,128], index: 5, kind: input, shape index: {}]
  %s6 = inlined_call_operand.vmem [shape: f32[1,32], index: 6, kind: input, shape index: {}]
  %s7 = inlined_call_operand.hbm [shape: f32[8,2,128], index: 7, kind: output, shape index: {}]
  %s8 = sld [smem:[#allocation0]]
  $region62: #{tpu_custom_call.1} parent=0
    _
  %s10 = ssub.s32 1, %s8
  %s11 = scalar_select 0, %s10, %s8
  $region1: #{tpu_custom_call.1} parent=0
    #allocation3 [shape = 'u8[8192]{0}', space=vmem, size = 0x2000, scoped, tag = 'input window, operand 0, single buffered']
    #allocation4 [shape = 's32[1]{0}', space=sflag, size = 0x4, scoped, tag = 'scoped memory for tpu_custom_call.1']
    #allocation5 [shape = 's32[1]{0}', space=sflag, size = 0x4, scoped, tag = 'scoped memory for tpu_custom_call.1']
    #allocation6 [shape = 'u8[8192]{0}', space=vmem, size = 0x2000, scoped, tag = 'input window, operand 1, single buffered']
    #allocation7 [shape = 's32[1]{0}', space=sflag, size = 0x4, scoped, tag = 'scoped memory for tpu_custom_call.1']
    #allocation8 [shape = 'u8[16384]{0}', space=vmem, size = 0x4000, scoped, tag = 'input window, operand 2, single buffered']
    #allocation9 [shape = 'u8[16384]{0}', space=vmem, size = 0x4000, scoped, tag = 'input window, operand 3, single buffered']
    #allocation10 [shape = 's32[1]{0}', space=sflag, size = 0x4, scoped, tag = 'scoped memory for tpu_custom_call.1']
    #allocation11 [shape = 'u8[16384]{0}', space=vmem, size = 0x4000, scoped, tag = 'input window, operand 4, single buffered']
    #allocation12 [shape = 'u8[8192]{0}', space=vmem, size = 0x2000, scoped, tag = 'output window, operand 0, single buffered']
    %12 = vsyncpa [#allocation4], 0
    %13 = vsyncpa [#allocation7], 0
    %14 = vsyncpa [#allocation10], 0
    %15 = vsyncpa [#allocation5], 0
    // Predicated region
    $region2: #{tpu_custom_call.1} parent=1 // pred_check
      _
    $region3: #{tpu_custom_call.1} parent=1 // pred_check_branch
      %17 = sbr.rel (0) target = $region5
    $region4: #{tpu_custom_call.1} parent=1 // pred_region
      %s19 = ssub.s32 256, 256
      %20 = vsyncadd [#allocation4], %s19
      %s21 = sshll.u32 [#allocation3], 4
      %s22 = int_to_ptr.vmem [resolvable:$true] %s21
      %27 = dma.hbm_to_vmem [thread:$0]  %s0, 256, %s22, [#allocation4], 32, 32, 2
    $region5: #{tpu_custom_call.1} parent=1 // pred_fallthru
      _
    // Predicated region
    $region6: #{tpu_custom_call.1} parent=1 // pred_check
      _
    $region7: #{tpu_custom_call.1} parent=1 // pred_check_branch
      %29 = sbr.rel (0) target = $region9
    $region8: #{tpu_custom_call.1} parent=1 // pred_region
      %s31 = ssub.s32 256, 256
      %32 = vsyncadd [#allocation7], %s31
      %s33 = sshll.u32 [#allocation6], 4
      %s34 = int_to_ptr.vmem [resolvable:$true] %s33
      %39 = dma.hbm_to_vmem [thread:$0]  %s1, 256, %s34, [#allocation7], 32, 32, 2
    $region9: #{tpu_custom_call.1} parent=1 // pred_fallthru
      _
    // Predicated region
    $region10: #{tpu_custom_call.1} parent=1 // pred_check
      _
    $region11: #{tpu_custom_call.1} parent=1 // pred_check_branch
      %41 = sbr.rel (0) target = $region13
    $region12: #{tpu_custom_call.1} parent=1 // pred_region
      %s43 = ssub.s32 512, 512
      %44 = vsyncadd [#allocation7], %s43
      %s45 = sshll.u32 [#allocation8], 4
      %s46 = int_to_ptr.vmem [resolvable:$true] %s45
      %51 = dma.hbm_to_vmem [thread:$0]  %s2, 512, %s46, [#allocation7], 128, 128, 8
    $region13: #{tpu_custom_call.1} parent=1 // pred_fallthru
      _
    // Predicated region
    $region14: #{tpu_custom_call.1} parent=1 // pred_check
      _
    $region15: #{tpu_custom_call.1} parent=1 // pred_check_branch
      %53 = sbr.rel (0) target = $region17
    $region16: #{tpu_custom_call.1} parent=1 // pred_region
      %s55 = ssub.s32 512, 512
      %56 = vsyncadd [#allocation10], %s55
      %s57 = sshll.u32 [#allocation9], 4
      %s58 = int_to_ptr.vmem [resolvable:$true] %s57
      %63 = dma.hbm_to_vmem [thread:$0]  %s3, 512, %s58, [#allocation10], 128, 128, 8
    $region17: #{tpu_custom_call.1} parent=1 // pred_fallthru
      _
    // Predicated region
    $region18: #{tpu_custom_call.1} parent=1 // pred_check
      _
    $region19: #{tpu_custom_call.1} parent=1 // pred_check_branch
      %65 = sbr.rel (0) target = $region21
    $region20: #{tpu_custom_call.1} parent=1 // pred_region
      %s67 = ssub.s32 512, 512
      %68 = vsyncadd [#allocation10], %s67
      %s69 = sshll.u32 [#allocation11], 4
      %s70 = int_to_ptr.vmem [resolvable:$true] %s69
      %75 = dma.hbm_to_vmem [thread:$0]  %s4, 512, %s70, [#allocation10], 128, 128, 8
    $region21: #{tpu_custom_call.1} parent=1 // pred_fallthru
      _
    // Predicated region
    $region22: #{tpu_custom_call.1} parent=1 // pred_check
      _
    $region23: #{tpu_custom_call.1} parent=1 // pred_check_branch
      %77 = sbr.rel (0) target = $region25
    $region24: #{tpu_custom_call.1} parent=1 // pred_region
      _
    $region25: #{tpu_custom_call.1} parent=1 // pred_fallthru
      _
    // Predicated region
    $region26: #{tpu_custom_call.1} parent=1 // pred_check
      _
    $region27: #{tpu_custom_call.1} parent=1 // pred_check_branch
      %79 = sbr.rel (0) target = $region29
    $region28: #{tpu_custom_call.1} parent=1 // pred_region
      _
    $region29: #{tpu_custom_call.1} parent=1 // pred_fallthru
      _
    // Predicated region
    $region30: #{tpu_custom_call.1} parent=1 // pred_check
      _
    $region31: #{tpu_custom_call.1} parent=1 // pred_check_branch
      %81 = sbr.rel (0) target = $region33
    $region32: #{tpu_custom_call.1} parent=1 // pred_region
      %82 = dma.done [#allocation4], 256
    $region33: #{tpu_custom_call.1} parent=1 // pred_fallthru
      _
    // Predicated region
    $region34: #{tpu_custom_call.1} parent=1 // pred_check
      _
    $region35: #{tpu_custom_call.1} parent=1 // pred_check_branch
      %84 = sbr.rel (0) target = $region37
    $region36: #{tpu_custom_call.1} parent=1 // pred_region
      %85 = dma.done [#allocation7], 256
    $region37: #{tpu_custom_call.1} parent=1 // pred_fallthru
      _
    // Predicated region
    $region38: #{tpu_custom_call.1} parent=1 // pred_check
      _
    $region39: #{tpu_custom_call.1} parent=1 // pred_check_branch
      %87 = sbr.rel (0) target = $region41
    $region40: #{tpu_custom_call.1} parent=1 // pred_region
      %88 = dma.done [#allocation7], 512
    $region41: #{tpu_custom_call.1} parent=1 // pred_fallthru
      _
    // Predicated region
    $region42: #{tpu_custom_call.1} parent=1 // pred_check
      _
    $region43: #{tpu_custom_call.1} parent=1 // pred_check_branch
      %90 = sbr.rel (0) target = $region45
    $region44: #{tpu_custom_call.1} parent=1 // pred_region
      %91 = dma.done [#allocation10], 512
    $region45: #{tpu_custom_call.1} parent=1 // pred_fallthru
      _
    // Predicated region
    $region46: #{tpu_custom_call.1} parent=1 // pred_check
      _
    $region47: #{tpu_custom_call.1} parent=1 // pred_check_branch
      %93 = sbr.rel (0) target = $region49
    $region48: #{tpu_custom_call.1} parent=1 // pred_region
      %94 = dma.done [#allocation10], 512
    $region49: #{tpu_custom_call.1} parent=1 // pred_fallthru
      _
    %p95 = scmp.eq.s32.totalorder 0, 0
    // Predicated region
    $region50: #{tpu_custom_call.1} parent=1 // pred_check
      %p96 = pneg %p95
    $region51: #{tpu_custom_call.1} parent=1 // pred_check_branch
      %98 = sbr.rel (%p96) target = $region53
    $region52: #{tpu_custom_call.1} parent=1 // pred_region
      %v99 = vld [vmem:[%s6] sm:$0x1]
      %v101 = vlaneseq
      %v102 = vshrl.u32 %v101, 7
      %v103 = vsub.s32 0, %v102
      %v104 = vrot.slane %v99, %v103
      %vm106 = vcmask 254976
      %107 = vst.msk [vmem:[#allocation2] sm:$0x3] %vm106, %v104
    $region53: #{tpu_custom_call.1} parent=1 // pred_fallthru
      _
    %v108 = vld [vmem:[#allocation8] sm:$0xff]
    %v109 = vld [vmem:[#allocation8 + $0x8] sm:$0xff]
    %v110 = vld [vmem:[#allocation8 + $0x10] sm:$0xff]
    %v111 = vld [vmem:[#allocation8 + $0x18] sm:$0xff]
    %v112 = vld [vmem:[#allocation9] sm:$0xff]
    %v113 = vld [vmem:[#allocation9 + $0x8] sm:$0xff]
    %v114 = vld [vmem:[#allocation9 + $0x10] sm:$0xff]
    %v115 = vld [vmem:[#allocation9 + $0x18] sm:$0xff]
    %v116 = vld [vmem:[#allocation11] sm:$0xff]
    %v117 = vld [vmem:[#allocation11 + $0x8] sm:$0xff]
    %v118 = vld [vmem:[#allocation11 + $0x10] sm:$0xff]
    %v119 = vld [vmem:[#allocation11 + $0x18] sm:$0xff]
    %v120 = vld [vmem:[%s5] sm:$0x1]
    %v121 = vld [vmem:[#allocation2] sm:$0x3]
    %v122 = vld [vmem:[#allocation3] sm:$0x3]
    %vm123 = vcmask 261120
    %v125 = vsel %vm123, %v121, 0
    %127 = vmatprep.subr.mxu0 0.0
    %128 = vmatpush1.msra.mxu0 0.0
    %129 = vmatprep.subr.mxu0 0.0
    %130 = vmatpush1.msra.mxu0 0.0
    %131 = vmatprep.subr.mxu0 0.0
    %132 = vmatpush1.msra.mxu0 0.0
    %133 = vmatprep.subr.mxu0 0.0
    %134 = vmatpush1.msra.mxu0 0.0
    %135 = vmatprep.subr.mxu0 0.0
    %136 = vmatpush1.msra.mxu0 0.0
    %137 = vmatprep.subr.mxu0 0.0
    %138 = vmatpush1.msra.mxu0 0.0
    %139 = vmatprep.subr.mxu0 0.0
    %140 = vmatpush1.msra.mxu0 0.0
    %141 = vmatprep.subr.mxu0 0.0
    %142 = vmatpush1.msra.mxu0 0.0
    %143 = vmatprep.subr.mxu0 0.0
    %144 = vmatpush1.msra.mxu0 0.0
    %145 = vmatprep.subr.mxu0 0.0
    %146 = vmatpush1.msra.mxu0 0.0
    %147 = vmatprep.subr.mxu0 0.0
    %148 = vmatpush1.msra.mxu0 0.0
    %149 = vmatprep.subr.mxu0 0.0
    %150 = vmatpush1.msra.mxu0 0.0
    %151 = vmatprep.subr.mxu0 0.0
    %152 = vmatpush1.msra.mxu0 %v111
    %153 = vmatprep.subr.mxu0 0.0
    %154 = vmatpush1.msra.mxu0 %v110
    %155 = vmatprep.subr.mxu0 0.0
    %156 = vmatpush1.msra.mxu0 %v109
    %157 = vmatprep.subr.mxu0 0.0
    %158 = vmatpush1.msra.mxu0 %v108
    %159 = vmatprep.subr.mxu0 0.0
    %160 = vmatpush2.msra.mxu0 0.0
    %161 = vmatprep.subr.mxu0 0.0
    %162 = vmatpush2.msra.mxu0 0.0
    %163 = vmatprep.subr.mxu0 0.0
    %164 = vmatpush2.msra.mxu0 0.0
    %165 = vmatprep.subr.mxu0 0.0
    %166 = vmatpush2.msra.mxu0 0.0
    %167 = vmatprep.subr.mxu0 0.0
    %168 = vmatpush2.msra.mxu0 0.0
    %169 = vmatprep.subr.mxu0 0.0
    %170 = vmatpush2.msra.mxu0 0.0
    %171 = vmatprep.subr.mxu0 0.0
    %172 = vmatpush2.msra.mxu0 0.0
    %173 = vmatprep.subr.mxu0 0.0
    %174 = vmatpush2.msra.mxu0 0.0
    %175 = vmatprep.subr.mxu0 0.0
    %176 = vmatpush2.msra.mxu0 0.0
    %177 = vmatprep.subr.mxu0 0.0
    %178 = vmatpush2.msra.mxu0 0.0
    %179 = vmatprep.subr.mxu0 0.0
    %180 = vmatpush2.msra.mxu0 0.0
    %181 = vmatprep.subr.mxu0 0.0
    %182 = vmatpush2.msra.mxu0 0.0
    %183 = vmatprep.subr.mxu0 0.0
    %184 = vmatpush2.msra.mxu0 0.0
    %185 = vmatprep.subr.mxu0 0.0
    %186 = vmatpush2.msra.mxu0 0.0
    %187 = vmatprep.subr.mxu0 0.0
    %188 = vmatpush2.msra.mxu0 0.0
    %189 = vmatprep.subr.mxu0 0.0
    %190 = vmatpush2.msra.mxu0 0.0
    %191 = vmatprep.mubr.f32.mxu0 0.0
    %192 = vmatmul.mubr.f32.gmra.mxu0 %v125
    %v193 = vpop.f32.mrf.mxu0
    %v194 = vadd.f32 %v122, %v193
    %v195 = vpop.f32.mrf.mxu0
    %196 = vdwg.mxu0
    %v197 = vxor.u32 %v194, 2147483648
    %v198 = vmul.f32 %v197, 1.442695
    %v199 = vpow.pop %v198
    %v200 = vadd.f32 %v199, 1.0
    %v201 = vrcp.pop %v200
    %v202 = vmul.f32 1.0, %v201
    %203 = vrot.lane.b32.xlu0 %v121, 32
    %v204 = vpop.permute.xlu0 %203
    %v206 = vmul.f32 %v202, %v204
    %v207 = vld [vmem:[#allocation6] sm:$0x3]
    %209 = vrot.lane.b32.xlu0 %v206, 96
    %v210 = vpop.permute.xlu0 %209
    %v211 = vsel %vm123, %v210, 0
    %213 = vmatprep.subr.mxu0 0.0
    %214 = vmatpush1.msra.mxu0 0.0
    %215 = vmatprep.subr.mxu0 0.0
    %216 = vmatpush1.msra.mxu0 0.0
    %217 = vmatprep.subr.mxu0 0.0
    %218 = vmatpush1.msra.mxu0 0.0
    %219 = vmatprep.subr.mxu0 0.0
    %220 = vmatpush1.msra.mxu0 0.0
    %221 = vmatprep.subr.mxu0 0.0
    %222 = vmatpush1.msra.mxu0 0.0
    %223 = vmatprep.subr.mxu0 0.0
    %224 = vmatpush1.msra.mxu0 0.0
    %225 = vmatprep.subr.mxu0 0.0
    %226 = vmatpush1.msra.mxu0 0.0
    %227 = vmatprep.subr.mxu0 0.0
    %228 = vmatpush1.msra.mxu0 0.0
    %229 = vmatprep.subr.mxu0 0.0
    %230 = vmatpush1.msra.mxu0 0.0
    %231 = vmatprep.subr.mxu0 0.0
    %232 = vmatpush1.msra.mxu0 0.0
    %233 = vmatprep.subr.mxu0 0.0
    %234 = vmatpush1.msra.mxu0 0.0
    %235 = vmatprep.subr.mxu0 0.0
    %236 = vmatpush1.msra.mxu0 0.0
    %237 = vmatprep.subr.mxu0 0.0
    %238 = vmatpush1.msra.mxu0 %v115
    %239 = vmatprep.subr.mxu0 0.0
    %240 = vmatpush1.msra.mxu0 %v114
    %241 = vmatprep.subr.mxu0 0.0
    %242 = vmatpush1.msra.mxu0 %v113
    %243 = vmatprep.subr.mxu0 0.0
    %244 = vmatpush1.msra.mxu0 %v112
    %245 = vmatprep.subr.mxu0 0.0
    %246 = vmatpush2.msra.mxu0 0.0
    %247 = vmatprep.subr.mxu0 0.0
    %248 = vmatpush2.msra.mxu0 0.0
    %249 = vmatprep.subr.mxu0 0.0
    %250 = vmatpush2.msra.mxu0 0.0
    %251 = vmatprep.subr.mxu0 0.0
    %252 = vmatpush2.msra.mxu0 0.0
    %253 = vmatprep.subr.mxu0 0.0
    %254 = vmatpush2.msra.mxu0 0.0
    %255 = vmatprep.subr.mxu0 0.0
    %256 = vmatpush2.msra.mxu0 0.0
    %257 = vmatprep.subr.mxu0 0.0
    %258 = vmatpush2.msra.mxu0 0.0
    %259 = vmatprep.subr.mxu0 0.0
    %260 = vmatpush2.msra.mxu0 0.0
    %261 = vmatprep.subr.mxu0 0.0
    %262 = vmatpush2.msra.mxu0 0.0
    %263 = vmatprep.subr.mxu0 0.0
    %264 = vmatpush2.msra.mxu0 0.0
    %265 = vmatprep.subr.mxu0 0.0
    %266 = vmatpush2.msra.mxu0 0.0
    %267 = vmatprep.subr.mxu0 0.0
    %268 = vmatpush2.msra.mxu0 0.0
    %269 = vmatprep.subr.mxu0 0.0
    %270 = vmatpush2.msra.mxu0 0.0
    %271 = vmatprep.subr.mxu0 0.0
    %272 = vmatpush2.msra.mxu0 0.0
    %273 = vmatprep.subr.mxu0 0.0
    %274 = vmatpush2.msra.mxu0 0.0
    %275 = vmatprep.subr.mxu0 0.0
    %276 = vmatpush2.msra.mxu0 0.0
    %277 = vmatprep.mubr.f32.mxu0 0.0
    %278 = vmatmul.mubr.f32.gmra.mxu0 %v211
    %v279 = vpop.f32.mrf.mxu0
    %v280 = vadd.f32 %v207, %v279
    %v281 = vpop.f32.mrf.mxu0
    %282 = vdwg.mxu0
    %v283 = vtanh.pop %v280
    %v284 = vsub.f32 1.0, %v202
    %v285 = vmul.f32 %v284, %v121
    %v286 = vmul.f32 %v202, %v283
    %v287 = vadd.f32 %v285, %v286
    %v289 = vlaneseq
    %v290 = vshrl.u32 %v289, 7
    %v291 = vsub.s32 0, %v290
    %v292 = vrot.slane %v120, %v291
    %v295 = vsel %vm123, %v287, 0
    %297 = vmatprep.subr.mxu0 0.0
    %298 = vmatpush1.msra.mxu0 0.0
    %299 = vmatprep.subr.mxu0 0.0
    %300 = vmatpush1.msra.mxu0 0.0
    %301 = vmatprep.subr.mxu0 0.0
    %302 = vmatpush1.msra.mxu0 0.0
    %303 = vmatprep.subr.mxu0 0.0
    %304 = vmatpush1.msra.mxu0 0.0
    %305 = vmatprep.subr.mxu0 0.0
    %306 = vmatpush1.msra.mxu0 0.0
    %307 = vmatprep.subr.mxu0 0.0
    %308 = vmatpush1.msra.mxu0 0.0
    %309 = vmatprep.subr.mxu0 0.0
    %310 = vmatpush1.msra.mxu0 0.0
    %311 = vmatprep.subr.mxu0 0.0
    %312 = vmatpush1.msra.mxu0 0.0
    %313 = vmatprep.subr.mxu0 0.0
    %314 = vmatpush1.msra.mxu0 0.0
    %315 = vmatprep.subr.mxu0 0.0
    %316 = vmatpush1.msra.mxu0 0.0
    %317 = vmatprep.subr.mxu0 0.0
    %318 = vmatpush1.msra.mxu0 0.0
    %319 = vmatprep.subr.mxu0 0.0
    %320 = vmatpush1.msra.mxu0 0.0
    %321 = vmatprep.subr.mxu0 0.0
    %322 = vmatpush1.msra.mxu0 %v119
    %323 = vmatprep.subr.mxu0 0.0
    %324 = vmatpush1.msra.mxu0 %v118
    %325 = vmatprep.subr.mxu0 0.0
    %326 = vmatpush1.msra.mxu0 %v117
    %327 = vmatprep.subr.mxu0 0.0
    %328 = vmatpush1.msra.mxu0 %v116
    %329 = vmatprep.subr.mxu0 0.0
    %330 = vmatpush2.msra.mxu0 0.0
    %331 = vmatprep.subr.mxu0 0.0
    %332 = vmatpush2.msra.mxu0 0.0
    %333 = vmatprep.subr.mxu0 0.0
    %334 = vmatpush2.msra.mxu0 0.0
    %335 = vmatprep.subr.mxu0 0.0
    %336 = vmatpush2.msra.mxu0 0.0
    %337 = vmatprep.subr.mxu0 0.0
    %338 = vmatpush2.msra.mxu0 0.0
    %339 = vmatprep.subr.mxu0 0.0
    %340 = vmatpush2.msra.mxu0 0.0
    %341 = vmatprep.subr.mxu0 0.0
    %342 = vmatpush2.msra.mxu0 0.0
    %343 = vmatprep.subr.mxu0 0.0
    %344 = vmatpush2.msra.mxu0 0.0
    %345 = vmatprep.subr.mxu0 0.0
    %346 = vmatpush2.msra.mxu0 0.0
    %347 = vmatprep.subr.mxu0 0.0
    %348 = vmatpush2.msra.mxu0 0.0
    %349 = vmatprep.subr.mxu0 0.0
    %350 = vmatpush2.msra.mxu0 0.0
    %351 = vmatprep.subr.mxu0 0.0
    %352 = vmatpush2.msra.mxu0 0.0
    %353 = vmatprep.subr.mxu0 0.0
    %354 = vmatpush2.msra.mxu0 0.0
    %355 = vmatprep.subr.mxu0 0.0
    %356 = vmatpush2.msra.mxu0 0.0
    %357 = vmatprep.subr.mxu0 0.0
    %358 = vmatpush2.msra.mxu0 0.0
    %359 = vmatprep.subr.mxu0 0.0
    %360 = vmatpush2.msra.mxu0 0.0
    %361 = vmatprep.mubr.f32.mxu0 0.0
    %362 = vmatmul.mubr.f32.gmra.mxu0 %v295
    %v363 = vpop.f32.mrf.mxu0
    %v364 = vadd.f32 %v292, %v363
    %v365 = vpop.f32.mrf.mxu0
    %366 = vdwg.mxu0
    %vm367 = vcmask 1041408
    %v368 = vsel %vm367, %v364, -inf
    %369 = vmax.xlane.f32.xlu0 %v368
    %v370 = vpop.xlane.xlu0 %369
    %v371 = vsub.f32 %v364, %v370
    %v372 = vmul.f32 %v371, 1.442695
    %v373 = vpow.pop %v372
    %v374 = vsel %vm367, %v373, 0.0
    %375 = vadd.xlane.f32.xlu0 %v374
    %v376 = vpop.xlane.xlu0 %375
    %v377 = vrcp.pop %v376
    %v378 = vmul.f32 %v373, %v377
    %379 = vst [vmem:[#allocation12] sm:$0x3] %v378
    %s380 = scalar_lea.vmem [#allocation3], 2
    %v381 = vld [vmem:[%s380] sm:$0x3]
    %382 = vmatprep.subr.mxu0 0.0
    %383 = vmatpush1.msra.mxu0 0.0
    %384 = vmatprep.subr.mxu0 0.0
    %385 = vmatpush1.msra.mxu0 0.0
    %386 = vmatprep.subr.mxu0 0.0
    %387 = vmatpush1.msra.mxu0 0.0
    %388 = vmatprep.subr.mxu0 0.0
    %389 = vmatpush1.msra.mxu0 0.0
    %390 = vmatprep.subr.mxu0 0.0
    %391 = vmatpush1.msra.mxu0 0.0
    %392 = vmatprep.subr.mxu0 0.0
    %393 = vmatpush1.msra.mxu0 0.0
    %394 = vmatprep.subr.mxu0 0.0
    %395 = vmatpush1.msra.mxu0 0.0
    %396 = vmatprep.subr.mxu0 0.0
    %397 = vmatpush1.msra.mxu0 0.0
    %398 = vmatprep.subr.mxu0 0.0
    %399 = vmatpush1.msra.mxu0 0.0
    %400 = vmatprep.subr.mxu0 0.0
    %401 = vmatpush1.msra.mxu0 0.0
    %402 = vmatprep.subr.mxu0 0.0
    %403 = vmatpush1.msra.mxu0 0.0
    %404 = vmatprep.subr.mxu0 0.0
    %405 = vmatpush1.msra.mxu0 0.0
    %406 = vmatprep.subr.mxu0 0.0
    %407 = vmatpush1.msra.mxu0 %v111
    %408 = vmatprep.subr.mxu0 0.0
    %409 = vmatpush1.msra.mxu0 %v110
    %410 = vmatprep.subr.mxu0 0.0
    %411 = vmatpush1.msra.mxu0 %v109
    %412 = vmatprep.subr.mxu0 0.0
    %413 = vmatpush1.msra.mxu0 %v108
    %414 = vmatprep.subr.mxu0 0.0
    %415 = vmatpush2.msra.mxu0 0.0
    %416 = vmatprep.subr.mxu0 0.0
    %417 = vmatpush2.msra.mxu0 0.0
    %418 = vmatprep.subr.mxu0 0.0
    %419 = vmatpush2.msra.mxu0 0.0
    %420 = vmatprep.subr.mxu0 0.0
    %421 = vmatpush2.msra.mxu0 0.0
    %422 = vmatprep.subr.mxu0 0.0
    %423 = vmatpush2.msra.mxu0 0.0
    %424 = vmatprep.subr.mxu0 0.0
    %425 = vmatpush2.msra.mxu0 0.0
    %426 = vmatprep.subr.mxu0 0.0
    %427 = vmatpush2.msra.mxu0 0.0
    %428 = vmatprep.subr.mxu0 0.0
    %429 = vmatpush2.msra.mxu0 0.0
    %430 = vmatprep.subr.mxu0 0.0
    %431 = vmatpush2.msra.mxu0 0.0
    %432 = vmatprep.subr.mxu0 0.0
    %433 = vmatpush2.msra.mxu0 0.0
    %434 = vmatprep.subr.mxu0 0.0
    %435 = vmatpush2.msra.mxu0 0.0
    %436 = vmatprep.subr.mxu0 0.0
    %437 = vmatpush2.msra.mxu0 0.0
    %438 = vmatprep.subr.mxu0 0.0
    %439 = vmatpush2.msra.mxu0 0.0
    %440 = vmatprep.subr.mxu0 0.0
    %441 = vmatpush2.msra.mxu0 0.0
    %442 = vmatprep.subr.mxu0 0.0
    %443 = vmatpush2.msra.mxu0 0.0
    %444 = vmatprep.subr.mxu0 0.0
    %445 = vmatpush2.msra.mxu0 0.0
    %446 = vmatprep.mubr.f32.mxu0 0.0
    %447 = vmatmul.mubr.f32.gmra.mxu0 %v295
    %v448 = vpop.f32.mrf.mxu0
    %v449 = vadd.f32 %v381, %v448
    %v450 = vpop.f32.mrf.mxu0
    %451 = vdwg.mxu0
    %v452 = vxor.u32 %v449, 2147483648
    %v453 = vmul.f32 %v452, 1.442695
    %v454 = vpow.pop %v453
    %v455 = vadd.f32 %v454, 1.0
    %v456 = vrcp.pop %v455
    %v457 = vmul.f32 1.0, %v456
    %458 = vrot.lane.b32.xlu0 %v287, 32
    %v459 = vpop.permute.xlu0 %458
    %v461 = vmul.f32 %v457, %v459
    %s462 = scalar_lea.vmem [#allocation6], 2
    %v463 = vld [vmem:[%s462] sm:$0x3]
    %465 = vrot.lane.b32.xlu0 %v461, 96
    %v466 = vpop.permute.xlu0 %465
    %v467 = vsel %vm123, %v466, 0
    %469 = vmatprep.subr.mxu0 0.0
    %470 = vmatpush1.msra.mxu0 0.0
    %471 = vmatprep.subr.mxu0 0.0
    %472 = vmatpush1.msra.mxu0 0.0
    %473 = vmatprep.subr.mxu0 0.0
    %474 = vmatpush1.msra.mxu0 0.0
    %475 = vmatprep.subr.mxu0 0.0
    %476 = vmatpush1.msra.mxu0 0.0
    %477 = vmatprep.subr.mxu0 0.0
    %478 = vmatpush1.msra.mxu0 0.0
    %479 = vmatprep.subr.mxu0 0.0
    %480 = vmatpush1.msra.mxu0 0.0
    %481 = vmatprep.subr.mxu0 0.0
    %482 = vmatpush1.msra.mxu0 0.0
    %483 = vmatprep.subr.mxu0 0.0
    %484 = vmatpush1.msra.mxu0 0.0
    %485 = vmatprep.subr.mxu0 0.0
    %486 = vmatpush1.msra.mxu0 0.0
    %487 = vmatprep.subr.mxu0 0.0
    %488 = vmatpush1.msra.mxu0 0.0
    %489 = vmatprep.subr.mxu0 0.0
    %490 = vmatpush1.msra.mxu0 0.0
    %491 = vmatprep.subr.mxu0 0.0
    %492 = vmatpush1.msra.mxu0 0.0
    %493 = vmatprep.subr.mxu0 0.0
    %494 = vmatpush1.msra.mxu0 %v115
    %495 = vmatprep.subr.mxu0 0.0
    %496 = vmatpush1.msra.mxu0 %v114
    %497 = vmatprep.subr.mxu0 0.0
    %498 = vmatpush1.msra.mxu0 %v113
    %499 = vmatprep.subr.mxu0 0.0
    %500 = vmatpush1.msra.mxu0 %v112
    %501 = vmatprep.subr.mxu0 0.0
    %502 = vmatpush2.msra.mxu0 0.0
    %503 = vmatprep.subr.mxu0 0.0
    %504 = vmatpush2.msra.mxu0 0.0
    %505 = vmatprep.subr.mxu0 0.0
    %506 = vmatpush2.msra.mxu0 0.0
    %507 = vmatprep.subr.mxu0 0.0
    %508 = vmatpush2.msra.mxu0 0.0
    %509 = vmatprep.subr.mxu0 0.0
    %510 = vmatpush2.msra.mxu0 0.0
    %511 = vmatprep.subr.mxu0 0.0
    %512 = vmatpush2.msra.mxu0 0.0
    %513 = vmatprep.subr.mxu0 0.0
    %514 = vmatpush2.msra.mxu0 0.0
    %515 = vmatprep.subr.mxu0 0.0
    %516 = vmatpush2.msra.mxu0 0.0
    %517 = vmatprep.subr.mxu0 0.0
    %518 = vmatpush2.msra.mxu0 0.0
    %519 = vmatprep.subr.mxu0 0.0
    %520 = vmatpush2.msra.mxu0 0.0
    %521 = vmatprep.subr.mxu0 0.0
    %522 = vmatpush2.msra.mxu0 0.0
    %523 = vmatprep.subr.mxu0 0.0
    %524 = vmatpush2.msra.mxu0 0.0
    %525 = vmatprep.subr.mxu0 0.0
    %526 = vmatpush2.msra.mxu0 0.0
    %527 = vmatprep.subr.mxu0 0.0
    %528 = vmatpush2.msra.mxu0 0.0
    %529 = vmatprep.subr.mxu0 0.0
    %530 = vmatpush2.msra.mxu0 0.0
    %531 = vmatprep.subr.mxu0 0.0
    %532 = vmatpush2.msra.mxu0 0.0
    %533 = vmatprep.mubr.f32.mxu0 0.0
    %534 = vmatmul.mubr.f32.gmra.mxu0 %v467
    %v535 = vpop.f32.mrf.mxu0
    %v536 = vadd.f32 %v463, %v535
    %v537 = vpop.f32.mrf.mxu0
    %538 = vdwg.mxu0
    %v539 = vtanh.pop %v536
    %v540 = vsub.f32 1.0, %v457
    %v541 = vmul.f32 %v540, %v287
    %v542 = vmul.f32 %v457, %v539
    %v543 = vadd.f32 %v541, %v542
    %v545 = vsel %vm123, %v543, 0
    %547 = vmatprep.subr.mxu0 0.0
    %548 = vmatpush1.msra.mxu0 0.0
    %549 = vmatprep.subr.mxu0 0.0
    %550 = vmatpush1.msra.mxu0 0.0
    %551 = vmatprep.subr.mxu0 0.0
    %552 = vmatpush1.msra.mxu0 0.0
    %553 = vmatprep.subr.mxu0 0.0
    %554 = vmatpush1.msra.mxu0 0.0
    %555 = vmatprep.subr.mxu0 0.0
    %556 = vmatpush1.msra.mxu0 0.0
    %557 = vmatprep.subr.mxu0 0.0
    %558 = vmatpush1.msra.mxu0 0.0
    %559 = vmatprep.subr.mxu0 0.0
    %560 = vmatpush1.msra.mxu0 0.0
    %561 = vmatprep.subr.mxu0 0.0
    %562 = vmatpush1.msra.mxu0 0.0
    %563 = vmatprep.subr.mxu0 0.0
    %564 = vmatpush1.msra.mxu0 0.0
    %565 = vmatprep.subr.mxu0 0.0
    %566 = vmatpush1.msra.mxu0 0.0
    %567 = vmatprep.subr.mxu0 0.0
    %568 = vmatpush1.msra.mxu0 0.0
    %569 = vmatprep.subr.mxu0 0.0
    %570 = vmatpush1.msra.mxu0 0.0
    %571 = vmatprep.subr.mxu0 0.0
    %572 = vmatpush1.msra.mxu0 %v119
    %573 = vmatprep.subr.mxu0 0.0
    %574 = vmatpush1.msra.mxu0 %v118
    %575 = vmatprep.subr.mxu0 0.0
    %576 = vmatpush1.msra.mxu0 %v117
    %577 = vmatprep.subr.mxu0 0.0
    %578 = vmatpush1.msra.mxu0 %v116
    %579 = vmatprep.subr.mxu0 0.0
    %580 = vmatpush2.msra.mxu0 0.0
    %581 = vmatprep.subr.mxu0 0.0
    %582 = vmatpush2.msra.mxu0 0.0
    %583 = vmatprep.subr.mxu0 0.0
    %584 = vmatpush2.msra.mxu0 0.0
    %585 = vmatprep.subr.mxu0 0.0
    %586 = vmatpush2.msra.mxu0 0.0
    %587 = vmatprep.subr.mxu0 0.0
    %588 = vmatpush2.msra.mxu0 0.0
    %589 = vmatprep.subr.mxu0 0.0
    %590 = vmatpush2.msra.mxu0 0.0
    %591 = vmatprep.subr.mxu0 0.0
    %592 = vmatpush2.msra.mxu0 0.0
    %593 = vmatprep.subr.mxu0 0.0
    %594 = vmatpush2.msra.mxu0 0.0
    %595 = vmatprep.subr.mxu0 0.0
    %596 = vmatpush2.msra.mxu0 0.0
    %597 = vmatprep.subr.mxu0 0.0
    %598 = vmatpush2.msra.mxu0 0.0
    %599 = vmatprep.subr.mxu0 0.0
    %600 = vmatpush2.msra.mxu0 0.0
    %601 = vmatprep.subr.mxu0 0.0
    %602 = vmatpush2.msra.mxu0 0.0
    %603 = vmatprep.subr.mxu0 0.0
    %604 = vmatpush2.msra.mxu0 0.0
    %605 = vmatprep.subr.mxu0 0.0
    %606 = vmatpush2.msra.mxu0 0.0
    %607 = vmatprep.subr.mxu0 0.0
    %608 = vmatpush2.msra.mxu0 0.0
    %609 = vmatprep.subr.mxu0 0.0
    %610 = vmatpush2.msra.mxu0 0.0
    %611 = vmatprep.mubr.f32.mxu0 0.0
    %612 = vmatmul.mubr.f32.gmra.mxu0 %v545
    %v613 = vpop.f32.mrf.mxu0
    %v614 = vadd.f32 %v292, %v613
    %v615 = vpop.f32.mrf.mxu0
    %616 = vdwg.mxu0
    %v617 = vsel %vm367, %v614, -inf
    %618 = vmax.xlane.f32.xlu0 %v617
    %v619 = vpop.xlane.xlu0 %618
    %v620 = vsub.f32 %v614, %v619
    %v621 = vmul.f32 %v620, 1.442695
    %v622 = vpow.pop %v621
    %v623 = vsel %vm367, %v622, 0.0
    %624 = vadd.xlane.f32.xlu0 %v623
    %v625 = vpop.xlane.xlu0 %624
    %v626 = vrcp.pop %v625
    %v627 = vmul.f32 %v622, %v626
    %s628 = scalar_lea.vmem [#allocation12], 2
    %629 = vst [vmem:[%s628] sm:$0x3] %v627
    %s630 = scalar_lea.vmem [#allocation3], 4
    %v631 = vld [vmem:[%s630] sm:$0x3]
    %632 = vmatprep.subr.mxu0 0.0
    %633 = vmatpush1.msra.mxu0 0.0
    %634 = vmatprep.subr.mxu0 0.0
    %635 = vmatpush1.msra.mxu0 0.0
    %636 = vmatprep.subr.mxu0 0.0
    %637 = vmatpush1.msra.mxu0 0.0
    %638 = vmatprep.subr.mxu0 0.0
    %639 = vmatpush1.msra.mxu0 0.0
    %640 = vmatprep.subr.mxu0 0.0
    %641 = vmatpush1.msra.mxu0 0.0
    %642 = vmatprep.subr.mxu0 0.0
    %643 = vmatpush1.msra.mxu0 0.0
    %644 = vmatprep.subr.mxu0 0.0
    %645 = vmatpush1.msra.mxu0 0.0
    %646 = vmatprep.subr.mxu0 0.0
    %647 = vmatpush1.msra.mxu0 0.0
    %648 = vmatprep.subr.mxu0 0.0
    %649 = vmatpush1.msra.mxu0 0.0
    %650 = vmatprep.subr.mxu0 0.0
    %651 = vmatpush1.msra.mxu0 0.0
    %652 = vmatprep.subr.mxu0 0.0
    %653 = vmatpush1.msra.mxu0 0.0
    %654 = vmatprep.subr.mxu0 0.0
    %655 = vmatpush1.msra.mxu0 0.0
    %656 = vmatprep.subr.mxu0 0.0
    %657 = vmatpush1.msra.mxu0 %v111
    %658 = vmatprep.subr.mxu0 0.0
    %659 = vmatpush1.msra.mxu0 %v110
    %660 = vmatprep.subr.mxu0 0.0
    %661 = vmatpush1.msra.mxu0 %v109
    %662 = vmatprep.subr.mxu0 0.0
    %663 = vmatpush1.msra.mxu0 %v108
    %664 = vmatprep.subr.mxu0 0.0
    %665 = vmatpush2.msra.mxu0 0.0
    %666 = vmatprep.subr.mxu0 0.0
    %667 = vmatpush2.msra.mxu0 0.0
    %668 = vmatprep.subr.mxu0 0.0
    %669 = vmatpush2.msra.mxu0 0.0
    %670 = vmatprep.subr.mxu0 0.0
    %671 = vmatpush2.msra.mxu0 0.0
    %672 = vmatprep.subr.mxu0 0.0
    %673 = vmatpush2.msra.mxu0 0.0
    %674 = vmatprep.subr.mxu0 0.0
    %675 = vmatpush2.msra.mxu0 0.0
    %676 = vmatprep.subr.mxu0 0.0
    %677 = vmatpush2.msra.mxu0 0.0
    %678 = vmatprep.subr.mxu0 0.0
    %679 = vmatpush2.msra.mxu0 0.0
    %680 = vmatprep.subr.mxu0 0.0
    %681 = vmatpush2.msra.mxu0 0.0
    %682 = vmatprep.subr.mxu0 0.0
    %683 = vmatpush2.msra.mxu0 0.0
    %684 = vmatprep.subr.mxu0 0.0
    %685 = vmatpush2.msra.mxu0 0.0
    %686 = vmatprep.subr.mxu0 0.0
    %687 = vmatpush2.msra.mxu0 0.0
    %688 = vmatprep.subr.mxu0 0.0
    %689 = vmatpush2.msra.mxu0 0.0
    %690 = vmatprep.subr.mxu0 0.0
    %691 = vmatpush2.msra.mxu0 0.0
    %692 = vmatprep.subr.mxu0 0.0
    %693 = vmatpush2.msra.mxu0 0.0
    %694 = vmatprep.subr.mxu0 0.0
    %695 = vmatpush2.msra.mxu0 0.0
    %696 = vmatprep.mubr.f32.mxu0 0.0
    %697 = vmatmul.mubr.f32.gmra.mxu0 %v545
    %v698 = vpop.f32.mrf.mxu0
    %v699 = vadd.f32 %v631, %v698
    %v700 = vpop.f32.mrf.mxu0
    %701 = vdwg.mxu0
    %v702 = vxor.u32 %v699, 2147483648
    %v703 = vmul.f32 %v702, 1.442695
    %v704 = vpow.pop %v703
    %v705 = vadd.f32 %v704, 1.0
    %v706 = vrcp.pop %v705
    %v707 = vmul.f32 1.0, %v706
    %708 = vrot.lane.b32.xlu0 %v543, 32
    %v709 = vpop.permute.xlu0 %708
    %v711 = vmul.f32 %v707, %v709
    %s712 = scalar_lea.vmem [#allocation6], 4
    %v713 = vld [vmem:[%s712] sm:$0x3]
    %715 = vrot.lane.b32.xlu0 %v711, 96
    %v716 = vpop.permute.xlu0 %715
    %v717 = vsel %vm123, %v716, 0
    %719 = vmatprep.subr.mxu0 0.0
    %720 = vmatpush1.msra.mxu0 0.0
    %721 = vmatprep.subr.mxu0 0.0
    %722 = vmatpush1.msra.mxu0 0.0
    %723 = vmatprep.subr.mxu0 0.0
    %724 = vmatpush1.msra.mxu0 0.0
    %725 = vmatprep.subr.mxu0 0.0
    %726 = vmatpush1.msra.mxu0 0.0
    %727 = vmatprep.subr.mxu0 0.0
    %728 = vmatpush1.msra.mxu0 0.0
    %729 = vmatprep.subr.mxu0 0.0
    %730 = vmatpush1.msra.mxu0 0.0
    %731 = vmatprep.subr.mxu0 0.0
    %732 = vmatpush1.msra.mxu0 0.0
    %733 = vmatprep.subr.mxu0 0.0
    %734 = vmatpush1.msra.mxu0 0.0
    %735 = vmatprep.subr.mxu0 0.0
    %736 = vmatpush1.msra.mxu0 0.0
    %737 = vmatprep.subr.mxu0 0.0
    %738 = vmatpush1.msra.mxu0 0.0
    %739 = vmatprep.subr.mxu0 0.0
    %740 = vmatpush1.msra.mxu0 0.0
    %741 = vmatprep.subr.mxu0 0.0
    %742 = vmatpush1.msra.mxu0 0.0
    %743 = vmatprep.subr.mxu0 0.0
    %744 = vmatpush1.msra.mxu0 %v115
    %745 = vmatprep.subr.mxu0 0.0
    %746 = vmatpush1.msra.mxu0 %v114
    %747 = vmatprep.subr.mxu0 0.0
    %748 = vmatpush1.msra.mxu0 %v113
    %749 = vmatprep.subr.mxu0 0.0
    %750 = vmatpush1.msra.mxu0 %v112
    %751 = vmatprep.subr.mxu0 0.0
    %752 = vmatpush2.msra.mxu0 0.0
    %753 = vmatprep.subr.mxu0 0.0
    %754 = vmatpush2.msra.mxu0 0.0
    %755 = vmatprep.subr.mxu0 0.0
    %756 = vmatpush2.msra.mxu0 0.0
    %757 = vmatprep.subr.mxu0 0.0
    %758 = vmatpush2.msra.mxu0 0.0
    %759 = vmatprep.subr.mxu0 0.0
    %760 = vmatpush2.msra.mxu0 0.0
    %761 = vmatprep.subr.mxu0 0.0
    %762 = vmatpush2.msra.mxu0 0.0
    %763 = vmatprep.subr.mxu0 0.0
    %764 = vmatpush2.msra.mxu0 0.0
    %765 = vmatprep.subr.mxu0 0.0
    %766 = vmatpush2.msra.mxu0 0.0
    %767 = vmatprep.subr.mxu0 0.0
    %768 = vmatpush2.msra.mxu0 0.0
    %769 = vmatprep.subr.mxu0 0.0
    %770 = vmatpush2.msra.mxu0 0.0
    %771 = vmatprep.subr.mxu0 0.0
    %772 = vmatpush2.msra.mxu0 0.0
    %773 = vmatprep.subr.mxu0 0.0
    %774 = vmatpush2.msra.mxu0 0.0
    %775 = vmatprep.subr.mxu0 0.0
    %776 = vmatpush2.msra.mxu0 0.0
    %777 = vmatprep.subr.mxu0 0.0
    %778 = vmatpush2.msra.mxu0 0.0
    %779 = vmatprep.subr.mxu0 0.0
    %780 = vmatpush2.msra.mxu0 0.0
    %781 = vmatprep.subr.mxu0 0.0
    %782 = vmatpush2.msra.mxu0 0.0
    %783 = vmatprep.mubr.f32.mxu0 0.0
    %784 = vmatmul.mubr.f32.gmra.mxu0 %v717
    %v785 = vpop.f32.mrf.mxu0
    %v786 = vadd.f32 %v713, %v785
    %v787 = vpop.f32.mrf.mxu0
    %788 = vdwg.mxu0
    %v789 = vtanh.pop %v786
    %v790 = vsub.f32 1.0, %v707
    %v791 = vmul.f32 %v790, %v543
    %v792 = vmul.f32 %v707, %v789
    %v793 = vadd.f32 %v791, %v792
    %v795 = vsel %vm123, %v793, 0
    %797 = vmatprep.subr.mxu0 0.0
    %798 = vmatpush1.msra.mxu0 0.0
    %799 = vmatprep.subr.mxu0 0.0
    %800 = vmatpush1.msra.mxu0 0.0
    %801 = vmatprep.subr.mxu0 0.0
    %802 = vmatpush1.msra.mxu0 0.0
    %803 = vmatprep.subr.mxu0 0.0
    %804 = vmatpush1.msra.mxu0 0.0
    %805 = vmatprep.subr.mxu0 0.0
    %806 = vmatpush1.msra.mxu0 0.0
    %807 = vmatprep.subr.mxu0 0.0
    %808 = vmatpush1.msra.mxu0 0.0
    %809 = vmatprep.subr.mxu0 0.0
    %810 = vmatpush1.msra.mxu0 0.0
    %811 = vmatprep.subr.mxu0 0.0
    %812 = vmatpush1.msra.mxu0 0.0
    %813 = vmatprep.subr.mxu0 0.0
    %814 = vmatpush1.msra.mxu0 0.0
    %815 = vmatprep.subr.mxu0 0.0
    %816 = vmatpush1.msra.mxu0 0.0
    %817 = vmatprep.subr.mxu0 0.0
    %818 = vmatpush1.msra.mxu0 0.0
    %819 = vmatprep.subr.mxu0 0.0
    %820 = vmatpush1.msra.mxu0 0.0
    %821 = vmatprep.subr.mxu0 0.0
    %822 = vmatpush1.msra.mxu0 %v119
    %823 = vmatprep.subr.mxu0 0.0
    %824 = vmatpush1.msra.mxu0 %v118
    %825 = vmatprep.subr.mxu0 0.0
    %826 = vmatpush1.msra.mxu0 %v117
    %827 = vmatprep.subr.mxu0 0.0
    %828 = vmatpush1.msra.mxu0 %v116
    %829 = vmatprep.subr.mxu0 0.0
    %830 = vmatpush2.msra.mxu0 0.0
    %831 = vmatprep.subr.mxu0 0.0
    %832 = vmatpush2.msra.mxu0 0.0
    %833 = vmatprep.subr.mxu0 0.0
    %834 = vmatpush2.msra.mxu0 0.0
    %835 = vmatprep.subr.mxu0 0.0
    %836 = vmatpush2.msra.mxu0 0.0
    %837 = vmatprep.subr.mxu0 0.0
    %838 = vmatpush2.msra.mxu0 0.0
    %839 = vmatprep.subr.mxu0 0.0
    %840 = vmatpush2.msra.mxu0 0.0
    %841 = vmatprep.subr.mxu0 0.0
    %842 = vmatpush2.msra.mxu0 0.0
    %843 = vmatprep.subr.mxu0 0.0
    %844 = vmatpush2.msra.mxu0 0.0
    %845 = vmatprep.subr.mxu0 0.0
    %846 = vmatpush2.msra.mxu0 0.0
    %847 = vmatprep.subr.mxu0 0.0
    %848 = vmatpush2.msra.mxu0 0.0
    %849 = vmatprep.subr.mxu0 0.0
    %850 = vmatpush2.msra.mxu0 0.0
    %851 = vmatprep.subr.mxu0 0.0
    %852 = vmatpush2.msra.mxu0 0.0
    %853 = vmatprep.subr.mxu0 0.0
    %854 = vmatpush2.msra.mxu0 0.0
    %855 = vmatprep.subr.mxu0 0.0
    %856 = vmatpush2.msra.mxu0 0.0
    %857 = vmatprep.subr.mxu0 0.0
    %858 = vmatpush2.msra.mxu0 0.0
    %859 = vmatprep.subr.mxu0 0.0
    %860 = vmatpush2.msra.mxu0 0.0
    %861 = vmatprep.mubr.f32.mxu0 0.0
    %862 = vmatmul.mubr.f32.gmra.mxu0 %v795
    %v863 = vpop.f32.mrf.mxu0
    %v864 = vadd.f32 %v292, %v863
    %v865 = vpop.f32.mrf.mxu0
    %866 = vdwg.mxu0
    %v867 = vsel %vm367, %v864, -inf
    %868 = vmax.xlane.f32.xlu0 %v867
    %v869 = vpop.xlane.xlu0 %868
    %v870 = vsub.f32 %v864, %v869
    %v871 = vmul.f32 %v870, 1.442695
    %v872 = vpow.pop %v871
    %v873 = vsel %vm367, %v872, 0.0
    %874 = vadd.xlane.f32.xlu0 %v873
    %v875 = vpop.xlane.xlu0 %874
    %v876 = vrcp.pop %v875
    %v877 = vmul.f32 %v872, %v876
    %s878 = scalar_lea.vmem [#allocation12], 4
    %879 = vst [vmem:[%s878] sm:$0x3] %v877
    %s880 = scalar_lea.vmem [#allocation3], 6
    %v881 = vld [vmem:[%s880] sm:$0x3]
    %882 = vmatprep.subr.mxu0 0.0
    %883 = vmatpush1.msra.mxu0 0.0
    %884 = vmatprep.subr.mxu0 0.0
    %885 = vmatpush1.msra.mxu0 0.0
    %886 = vmatprep.subr.mxu0 0.0
    %887 = vmatpush1.msra.mxu0 0.0
    %888 = vmatprep.subr.mxu0 0.0
    %889 = vmatpush1.msra.mxu0 0.0
    %890 = vmatprep.subr.mxu0 0.0
    %891 = vmatpush1.msra.mxu0 0.0
    %892 = vmatprep.subr.mxu0 0.0
    %893 = vmatpush1.msra.mxu0 0.0
    %894 = vmatprep.subr.mxu0 0.0
    %895 = vmatpush1.msra.mxu0 0.0
    %896 = vmatprep.subr.mxu0 0.0
    %897 = vmatpush1.msra.mxu0 0.0
    %898 = vmatprep.subr.mxu0 0.0
    %899 = vmatpush1.msra.mxu0 0.0
    %900 = vmatprep.subr.mxu0 0.0
    %901 = vmatpush1.msra.mxu0 0.0
    %902 = vmatprep.subr.mxu0 0.0
    %903 = vmatpush1.msra.mxu0 0.0
    %904 = vmatprep.subr.mxu0 0.0
    %905 = vmatpush1.msra.mxu0 0.0
    %906 = vmatprep.subr.mxu0 0.0
    %907 = vmatpush1.msra.mxu0 %v111
    %908 = vmatprep.subr.mxu0 0.0
    %909 = vmatpush1.msra.mxu0 %v110
    %910 = vmatprep.subr.mxu0 0.0
    %911 = vmatpush1.msra.mxu0 %v109
    %912 = vmatprep.subr.mxu0 0.0
    %913 = vmatpush1.msra.mxu0 %v108
    %914 = vmatprep.subr.mxu0 0.0
    %915 = vmatpush2.msra.mxu0 0.0
    %916 = vmatprep.subr.mxu0 0.0
    %917 = vmatpush2.msra.mxu0 0.0
    %918 = vmatprep.subr.mxu0 0.0
    %919 = vmatpush2.msra.mxu0 0.0
    %920 = vmatprep.subr.mxu0 0.0
    %921 = vmatpush2.msra.mxu0 0.0
    %922 = vmatprep.subr.mxu0 0.0
    %923 = vmatpush2.msra.mxu0 0.0
    %924 = vmatprep.subr.mxu0 0.0
    %925 = vmatpush2.msra.mxu0 0.0
    %926 = vmatprep.subr.mxu0 0.0
    %927 = vmatpush2.msra.mxu0 0.0
    %928 = vmatprep.subr.mxu0 0.0
    %929 = vmatpush2.msra.mxu0 0.0
    %930 = vmatprep.subr.mxu0 0.0
    %931 = vmatpush2.msra.mxu0 0.0
    %932 = vmatprep.subr.mxu0 0.0
    %933 = vmatpush2.msra.mxu0 0.0
    %934 = vmatprep.subr.mxu0 0.0
    %935 = vmatpush2.msra.mxu0 0.0
    %936 = vmatprep.subr.mxu0 0.0
    %937 = vmatpush2.msra.mxu0 0.0
    %938 = vmatprep.subr.mxu0 0.0
    %939 = vmatpush2.msra.mxu0 0.0
    %940 = vmatprep.subr.mxu0 0.0
    %941 = vmatpush2.msra.mxu0 0.0
    %942 = vmatprep.subr.mxu0 0.0
    %943 = vmatpush2.msra.mxu0 0.0
    %944 = vmatprep.subr.mxu0 0.0
    %945 = vmatpush2.msra.mxu0 0.0
    %946 = vmatprep.mubr.f32.mxu0 0.0
    %947 = vmatmul.mubr.f32.gmra.mxu0 %v795
    %v948 = vpop.f32.mrf.mxu0
    %v949 = vadd.f32 %v881, %v948
    %v950 = vpop.f32.mrf.mxu0
    %951 = vdwg.mxu0
    %v952 = vxor.u32 %v949, 2147483648
    %v953 = vmul.f32 %v952, 1.442695
    %v954 = vpow.pop %v953
    %v955 = vadd.f32 %v954, 1.0
    %v956 = vrcp.pop %v955
    %v957 = vmul.f32 1.0, %v956
    %958 = vrot.lane.b32.xlu0 %v793, 32
    %v959 = vpop.permute.xlu0 %958
    %v961 = vmul.f32 %v957, %v959
    %s962 = scalar_lea.vmem [#allocation6], 6
    %v963 = vld [vmem:[%s962] sm:$0x3]
    %965 = vrot.lane.b32.xlu0 %v961, 96
    %v966 = vpop.permute.xlu0 %965
    %v967 = vsel %vm123, %v966, 0
    %969 = vmatprep.subr.mxu0 0.0
    %970 = vmatpush1.msra.mxu0 0.0
    %971 = vmatprep.subr.mxu0 0.0
    %972 = vmatpush1.msra.mxu0 0.0
    %973 = vmatprep.subr.mxu0 0.0
    %974 = vmatpush1.msra.mxu0 0.0
    %975 = vmatprep.subr.mxu0 0.0
    %976 = vmatpush1.msra.mxu0 0.0
    %977 = vmatprep.subr.mxu0 0.0
    %978 = vmatpush1.msra.mxu0 0.0
    %979 = vmatprep.subr.mxu0 0.0
    %980 = vmatpush1.msra.mxu0 0.0
    %981 = vmatprep.subr.mxu0 0.0
    %982 = vmatpush1.msra.mxu0 0.0
    %983 = vmatprep.subr.mxu0 0.0
    %984 = vmatpush1.msra.mxu0 0.0
    %985 = vmatprep.subr.mxu0 0.0
    %986 = vmatpush1.msra.mxu0 0.0
    %987 = vmatprep.subr.mxu0 0.0
    %988 = vmatpush1.msra.mxu0 0.0
    %989 = vmatprep.subr.mxu0 0.0
    %990 = vmatpush1.msra.mxu0 0.0
    %991 = vmatprep.subr.mxu0 0.0
    %992 = vmatpush1.msra.mxu0 0.0
    %993 = vmatprep.subr.mxu0 0.0
    %994 = vmatpush1.msra.mxu0 %v115
    %995 = vmatprep.subr.mxu0 0.0
    %996 = vmatpush1.msra.mxu0 %v114
    %997 = vmatprep.subr.mxu0 0.0
    %998 = vmatpush1.msra.mxu0 %v113
    %999 = vmatprep.subr.mxu0 0.0
    %1000 = vmatpush1.msra.mxu0 %v112
    %1001 = vmatprep.subr.mxu0 0.0
    %1002 = vmatpush2.msra.mxu0 0.0
    %1003 = vmatprep.subr.mxu0 0.0
    %1004 = vmatpush2.msra.mxu0 0.0
    %1005 = vmatprep.subr.mxu0 0.0
    %1006 = vmatpush2.msra.mxu0 0.0
    %1007 = vmatprep.subr.mxu0 0.0
    %1008 = vmatpush2.msra.mxu0 0.0
    %1009 = vmatprep.subr.mxu0 0.0
    %1010 = vmatpush2.msra.mxu0 0.0
    %1011 = vmatprep.subr.mxu0 0.0
    %1012 = vmatpush2.msra.mxu0 0.0
    %1013 = vmatprep.subr.mxu0 0.0
    %1014 = vmatpush2.msra.mxu0 0.0
    %1015 = vmatprep.subr.mxu0 0.0
    %1016 = vmatpush2.msra.mxu0 0.0
    %1017 = vmatprep.subr.mxu0 0.0
    %1018 = vmatpush2.msra.mxu0 0.0
    %1019 = vmatprep.subr.mxu0 0.0
    %1020 = vmatpush2.msra.mxu0 0.0
    %1021 = vmatprep.subr.mxu0 0.0
    %1022 = vmatpush2.msra.mxu0 0.0
    %1023 = vmatprep.subr.mxu0 0.0
    %1024 = vmatpush2.msra.mxu0 0.0
    %1025 = vmatprep.subr.mxu0 0.0
    %1026 = vmatpush2.msra.mxu0 0.0
    %1027 = vmatprep.subr.mxu0 0.0
    %1028 = vmatpush2.msra.mxu0 0.0
    %1029 = vmatprep.subr.mxu0 0.0
    %1030 = vmatpush2.msra.mxu0 0.0
    %1031 = vmatprep.subr.mxu0 0.0
    %1032 = vmatpush2.msra.mxu0 0.0
    %1033 = vmatprep.mubr.f32.mxu0 0.0
    %1034 = vmatmul.mubr.f32.gmra.mxu0 %v967
    %v1035 = vpop.f32.mrf.mxu0
    %v1036 = vadd.f32 %v963, %v1035
    %v1037 = vpop.f32.mrf.mxu0
    %1038 = vdwg.mxu0
    %v1039 = vtanh.pop %v1036
    %v1040 = vsub.f32 1.0, %v957
    %v1041 = vmul.f32 %v1040, %v793
    %v1042 = vmul.f32 %v957, %v1039
    %v1043 = vadd.f32 %v1041, %v1042
    %v1045 = vsel %vm123, %v1043, 0
    %1047 = vmatprep.subr.mxu0 0.0
    %1048 = vmatpush1.msra.mxu0 0.0
    %1049 = vmatprep.subr.mxu0 0.0
    %1050 = vmatpush1.msra.mxu0 0.0
    %1051 = vmatprep.subr.mxu0 0.0
    %1052 = vmatpush1.msra.mxu0 0.0
    %1053 = vmatprep.subr.mxu0 0.0
    %1054 = vmatpush1.msra.mxu0 0.0
    %1055 = vmatprep.subr.mxu0 0.0
    %1056 = vmatpush1.msra.mxu0 0.0
    %1057 = vmatprep.subr.mxu0 0.0
    %1058 = vmatpush1.msra.mxu0 0.0
    %1059 = vmatprep.subr.mxu0 0.0
    %1060 = vmatpush1.msra.mxu0 0.0
    %1061 = vmatprep.subr.mxu0 0.0
    %1062 = vmatpush1.msra.mxu0 0.0
    %1063 = vmatprep.subr.mxu0 0.0
    %1064 = vmatpush1.msra.mxu0 0.0
    %1065 = vmatprep.subr.mxu0 0.0
    %1066 = vmatpush1.msra.mxu0 0.0
    %1067 = vmatprep.subr.mxu0 0.0
    %1068 = vmatpush1.msra.mxu0 0.0
    %1069 = vmatprep.subr.mxu0 0.0
    %1070 = vmatpush1.msra.mxu0 0.0
    %1071 = vmatprep.subr.mxu0 0.0
    %1072 = vmatpush1.msra.mxu0 %v119
    %1073 = vmatprep.subr.mxu0 0.0
    %1074 = vmatpush1.msra.mxu0 %v118
    %1075 = vmatprep.subr.mxu0 0.0
    %1076 = vmatpush1.msra.mxu0 %v117
    %1077 = vmatprep.subr.mxu0 0.0
    %1078 = vmatpush1.msra.mxu0 %v116
    %1079 = vmatprep.subr.mxu0 0.0
    %1080 = vmatpush2.msra.mxu0 0.0
    %1081 = vmatprep.subr.mxu0 0.0
    %1082 = vmatpush2.msra.mxu0 0.0
    %1083 = vmatprep.subr.mxu0 0.0
    %1084 = vmatpush2.msra.mxu0 0.0
    %1085 = vmatprep.subr.mxu0 0.0
    %1086 = vmatpush2.msra.mxu0 0.0
    %1087 = vmatprep.subr.mxu0 0.0
    %1088 = vmatpush2.msra.mxu0 0.0
    %1089 = vmatprep.subr.mxu0 0.0
    %1090 = vmatpush2.msra.mxu0 0.0
    %1091 = vmatprep.subr.mxu0 0.0
    %1092 = vmatpush2.msra.mxu0 0.0
    %1093 = vmatprep.subr.mxu0 0.0
    %1094 = vmatpush2.msra.mxu0 0.0
    %1095 = vmatprep.subr.mxu0 0.0
    %1096 = vmatpush2.msra.mxu0 0.0
    %1097 = vmatprep.subr.mxu0 0.0
    %1098 = vmatpush2.msra.mxu0 0.0
    %1099 = vmatprep.subr.mxu0 0.0
    %1100 = vmatpush2.msra.mxu0 0.0
    %1101 = vmatprep.subr.mxu0 0.0
    %1102 = vmatpush2.msra.mxu0 0.0
    %1103 = vmatprep.subr.mxu0 0.0
    %1104 = vmatpush2.msra.mxu0 0.0
    %1105 = vmatprep.subr.mxu0 0.0
    %1106 = vmatpush2.msra.mxu0 0.0
    %1107 = vmatprep.subr.mxu0 0.0
    %1108 = vmatpush2.msra.mxu0 0.0
    %1109 = vmatprep.subr.mxu0 0.0
    %1110 = vmatpush2.msra.mxu0 0.0
    %1111 = vmatprep.mubr.f32.mxu0 0.0
    %1112 = vmatmul.mubr.f32.gmra.mxu0 %v1045
    %v1113 = vpop.f32.mrf.mxu0
    %v1114 = vadd.f32 %v292, %v1113
    %v1115 = vpop.f32.mrf.mxu0
    %1116 = vdwg.mxu0
    %v1117 = vsel %vm367, %v1114, -inf
    %1118 = vmax.xlane.f32.xlu0 %v1117
    %v1119 = vpop.xlane.xlu0 %1118
    %v1120 = vsub.f32 %v1114, %v1119
    %v1121 = vmul.f32 %v1120, 1.442695
    %v1122 = vpow.pop %v1121
    %v1123 = vsel %vm367, %v1122, 0.0
    %1124 = vadd.xlane.f32.xlu0 %v1123
    %v1125 = vpop.xlane.xlu0 %1124
    %v1126 = vrcp.pop %v1125
    %v1127 = vmul.f32 %v1122, %v1126
    %s1128 = scalar_lea.vmem [#allocation12], 6
    %1129 = vst [vmem:[%s1128] sm:$0x3] %v1127
    %s1130 = scalar_lea.vmem [#allocation3], 8
    %v1131 = vld [vmem:[%s1130] sm:$0x3]
    %1132 = vmatprep.subr.mxu0 0.0
    %1133 = vmatpush1.msra.mxu0 0.0
    %1134 = vmatprep.subr.mxu0 0.0
    %1135 = vmatpush1.msra.mxu0 0.0
    %1136 = vmatprep.subr.mxu0 0.0
    %1137 = vmatpush1.msra.mxu0 0.0
    %1138 = vmatprep.subr.mxu0 0.0
    %1139 = vmatpush1.msra.mxu0 0.0
    %1140 = vmatprep.subr.mxu0 0.0
    %1141 = vmatpush1.msra.mxu0 0.0
    %1142 = vmatprep.subr.mxu0 0.0
    %1143 = vmatpush1.msra.mxu0 0.0
    %1144 = vmatprep.subr.mxu0 0.0
    %1145 = vmatpush1.msra.mxu0 0.0
    %1146 = vmatprep.subr.mxu0 0.0
    %1147 = vmatpush1.msra.mxu0 0.0
    %1148 = vmatprep.subr.mxu0 0.0
    %1149 = vmatpush1.msra.mxu0 0.0
    %1150 = vmatprep.subr.mxu0 0.0
    %1151 = vmatpush1.msra.mxu0 0.0
    %1152 = vmatprep.subr.mxu0 0.0
    %1153 = vmatpush1.msra.mxu0 0.0
    %1154 = vmatprep.subr.mxu0 0.0
    %1155 = vmatpush1.msra.mxu0 0.0
    %1156 = vmatprep.subr.mxu0 0.0
    %1157 = vmatpush1.msra.mxu0 %v111
    %1158 = vmatprep.subr.mxu0 0.0
    %1159 = vmatpush1.msra.mxu0 %v110
    %1160 = vmatprep.subr.mxu0 0.0
    %1161 = vmatpush1.msra.mxu0 %v109
    %1162 = vmatprep.subr.mxu0 0.0
    %1163 = vmatpush1.msra.mxu0 %v108
    %1164 = vmatprep.subr.mxu0 0.0
    %1165 = vmatpush2.msra.mxu0 0.0
    %1166 = vmatprep.subr.mxu0 0.0
    %1167 = vmatpush2.msra.mxu0 0.0
    %1168 = vmatprep.subr.mxu0 0.0
    %1169 = vmatpush2.msra.mxu0 0.0
    %1170 = vmatprep.subr.mxu0 0.0
    %1171 = vmatpush2.msra.mxu0 0.0
    %1172 = vmatprep.subr.mxu0 0.0
    %1173 = vmatpush2.msra.mxu0 0.0
    %1174 = vmatprep.subr.mxu0 0.0
    %1175 = vmatpush2.msra.mxu0 0.0
    %1176 = vmatprep.subr.mxu0 0.0
    %1177 = vmatpush2.msra.mxu0 0.0
    %1178 = vmatprep.subr.mxu0 0.0
    %1179 = vmatpush2.msra.mxu0 0.0
    %1180 = vmatprep.subr.mxu0 0.0
    %1181 = vmatpush2.msra.mxu0 0.0
    %1182 = vmatprep.subr.mxu0 0.0
    %1183 = vmatpush2.msra.mxu0 0.0
    %1184 = vmatprep.subr.mxu0 0.0
    %1185 = vmatpush2.msra.mxu0 0.0
    %1186 = vmatprep.subr.mxu0 0.0
    %1187 = vmatpush2.msra.mxu0 0.0
    %1188 = vmatprep.subr.mxu0 0.0
    %1189 = vmatpush2.msra.mxu0 0.0
    %1190 = vmatprep.subr.mxu0 0.0
    %1191 = vmatpush2.msra.mxu0 0.0
    %1192 = vmatprep.subr.mxu0 0.0
    %1193 = vmatpush2.msra.mxu0 0.0
    %1194 = vmatprep.subr.mxu0 0.0
    %1195 = vmatpush2.msra.mxu0 0.0
    %1196 = vmatprep.mubr.f32.mxu0 0.0
    %1197 = vmatmul.mubr.f32.gmra.mxu0 %v1045
    %v1198 = vpop.f32.mrf.mxu0
    %v1199 = vadd.f32 %v1131, %v1198
    %v1200 = vpop.f32.mrf.mxu0
    %1201 = vdwg.mxu0
    %v1202 = vxor.u32 %v1199, 2147483648
    %v1203 = vmul.f32 %v1202, 1.442695
    %v1204 = vpow.pop %v1203
    %v1205 = vadd.f32 %v1204, 1.0
    %v1206 = vrcp.pop %v1205
    %v1207 = vmul.f32 1.0, %v1206
    %1208 = vrot.lane.b32.xlu0 %v1043, 32
    %v1209 = vpop.permute.xlu0 %1208
    %v1211 = vmul.f32 %v1207, %v1209
    %s1212 = scalar_lea.vmem [#allocation6], 8
    %v1213 = vld [vmem:[%s1212] sm:$0x3]
    %1215 = vrot.lane.b32.xlu0 %v1211, 96
    %v1216 = vpop.permute.xlu0 %1215
    %v1217 = vsel %vm123, %v1216, 0
    %1219 = vmatprep.subr.mxu0 0.0
    %1220 = vmatpush1.msra.mxu0 0.0
    %1221 = vmatprep.subr.mxu0 0.0
    %1222 = vmatpush1.msra.mxu0 0.0
    %1223 = vmatprep.subr.mxu0 0.0
    %1224 = vmatpush1.msra.mxu0 0.0
    %1225 = vmatprep.subr.mxu0 0.0
    %1226 = vmatpush1.msra.mxu0 0.0
    %1227 = vmatprep.subr.mxu0 0.0
    %1228 = vmatpush1.msra.mxu0 0.0
    %1229 = vmatprep.subr.mxu0 0.0
    %1230 = vmatpush1.msra.mxu0 0.0
    %1231 = vmatprep.subr.mxu0 0.0
    %1232 = vmatpush1.msra.mxu0 0.0
    %1233 = vmatprep.subr.mxu0 0.0
    %1234 = vmatpush1.msra.mxu0 0.0
    %1235 = vmatprep.subr.mxu0 0.0
    %1236 = vmatpush1.msra.mxu0 0.0
    %1237 = vmatprep.subr.mxu0 0.0
    %1238 = vmatpush1.msra.mxu0 0.0
    %1239 = vmatprep.subr.mxu0 0.0
    %1240 = vmatpush1.msra.mxu0 0.0
    %1241 = vmatprep.subr.mxu0 0.0
    %1242 = vmatpush1.msra.mxu0 0.0
    %1243 = vmatprep.subr.mxu0 0.0
    %1244 = vmatpush1.msra.mxu0 %v115
    %1245 = vmatprep.subr.mxu0 0.0
    %1246 = vmatpush1.msra.mxu0 %v114
    %1247 = vmatprep.subr.mxu0 0.0
    %1248 = vmatpush1.msra.mxu0 %v113
    %1249 = vmatprep.subr.mxu0 0.0
    %1250 = vmatpush1.msra.mxu0 %v112
    %1251 = vmatprep.subr.mxu0 0.0
    %1252 = vmatpush2.msra.mxu0 0.0
    %1253 = vmatprep.subr.mxu0 0.0
    %1254 = vmatpush2.msra.mxu0 0.0
    %1255 = vmatprep.subr.mxu0 0.0
    %1256 = vmatpush2.msra.mxu0 0.0
    %1257 = vmatprep.subr.mxu0 0.0
    %1258 = vmatpush2.msra.mxu0 0.0
    %1259 = vmatprep.subr.mxu0 0.0
    %1260 = vmatpush2.msra.mxu0 0.0
    %1261 = vmatprep.subr.mxu0 0.0
    %1262 = vmatpush2.msra.mxu0 0.0
    %1263 = vmatprep.subr.mxu0 0.0
    %1264 = vmatpush2.msra.mxu0 0.0
    %1265 = vmatprep.subr.mxu0 0.0
    %1266 = vmatpush2.msra.mxu0 0.0
    %1267 = vmatprep.subr.mxu0 0.0
    %1268 = vmatpush2.msra.mxu0 0.0
    %1269 = vmatprep.subr.mxu0 0.0
    %1270 = vmatpush2.msra.mxu0 0.0
    %1271 = vmatprep.subr.mxu0 0.0
    %1272 = vmatpush2.msra.mxu0 0.0
    %1273 = vmatprep.subr.mxu0 0.0
    %1274 = vmatpush2.msra.mxu0 0.0
    %1275 = vmatprep.subr.mxu0 0.0
    %1276 = vmatpush2.msra.mxu0 0.0
    %1277 = vmatprep.subr.mxu0 0.0
    %1278 = vmatpush2.msra.mxu0 0.0
    %1279 = vmatprep.subr.mxu0 0.0
    %1280 = vmatpush2.msra.mxu0 0.0
    %1281 = vmatprep.subr.mxu0 0.0
    %1282 = vmatpush2.msra.mxu0 0.0
    %1283 = vmatprep.mubr.f32.mxu0 0.0
    %1284 = vmatmul.mubr.f32.gmra.mxu0 %v1217
    %v1285 = vpop.f32.mrf.mxu0
    %v1286 = vadd.f32 %v1213, %v1285
    %v1287 = vpop.f32.mrf.mxu0
    %1288 = vdwg.mxu0
    %v1289 = vtanh.pop %v1286
    %v1290 = vsub.f32 1.0, %v1207
    %v1291 = vmul.f32 %v1290, %v1043
    %v1292 = vmul.f32 %v1207, %v1289
    %v1293 = vadd.f32 %v1291, %v1292
    %v1295 = vsel %vm123, %v1293, 0
    %1297 = vmatprep.subr.mxu0 0.0
    %1298 = vmatpush1.msra.mxu0 0.0
    %1299 = vmatprep.subr.mxu0 0.0
    %1300 = vmatpush1.msra.mxu0 0.0
    %1301 = vmatprep.subr.mxu0 0.0
    %1302 = vmatpush1.msra.mxu0 0.0
    %1303 = vmatprep.subr.mxu0 0.0
    %1304 = vmatpush1.msra.mxu0 0.0
    %1305 = vmatprep.subr.mxu0 0.0
    %1306 = vmatpush1.msra.mxu0 0.0
    %1307 = vmatprep.subr.mxu0 0.0
    %1308 = vmatpush1.msra.mxu0 0.0
    %1309 = vmatprep.subr.mxu0 0.0
    %1310 = vmatpush1.msra.mxu0 0.0
    %1311 = vmatprep.subr.mxu0 0.0
    %1312 = vmatpush1.msra.mxu0 0.0
    %1313 = vmatprep.subr.mxu0 0.0
    %1314 = vmatpush1.msra.mxu0 0.0
    %1315 = vmatprep.subr.mxu0 0.0
    %1316 = vmatpush1.msra.mxu0 0.0
    %1317 = vmatprep.subr.mxu0 0.0
    %1318 = vmatpush1.msra.mxu0 0.0
    %1319 = vmatprep.subr.mxu0 0.0
    %1320 = vmatpush1.msra.mxu0 0.0
    %1321 = vmatprep.subr.mxu0 0.0
    %1322 = vmatpush1.msra.mxu0 %v119
    %1323 = vmatprep.subr.mxu0 0.0
    %1324 = vmatpush1.msra.mxu0 %v118
    %1325 = vmatprep.subr.mxu0 0.0
    %1326 = vmatpush1.msra.mxu0 %v117
    %1327 = vmatprep.subr.mxu0 0.0
    %1328 = vmatpush1.msra.mxu0 %v116
    %1329 = vmatprep.subr.mxu0 0.0
    %1330 = vmatpush2.msra.mxu0 0.0
    %1331 = vmatprep.subr.mxu0 0.0
    %1332 = vmatpush2.msra.mxu0 0.0
    %1333 = vmatprep.subr.mxu0 0.0
    %1334 = vmatpush2.msra.mxu0 0.0
    %1335 = vmatprep.subr.mxu0 0.0
    %1336 = vmatpush2.msra.mxu0 0.0
    %1337 = vmatprep.subr.mxu0 0.0
    %1338 = vmatpush2.msra.mxu0 0.0
    %1339 = vmatprep.subr.mxu0 0.0
    %1340 = vmatpush2.msra.mxu0 0.0
    %1341 = vmatprep.subr.mxu0 0.0
    %1342 = vmatpush2.msra.mxu0 0.0
    %1343 = vmatprep.subr.mxu0 0.0
    %1344 = vmatpush2.msra.mxu0 0.0
    %1345 = vmatprep.subr.mxu0 0.0
    %1346 = vmatpush2.msra.mxu0 0.0
    %1347 = vmatprep.subr.mxu0 0.0
    %1348 = vmatpush2.msra.mxu0 0.0
    %1349 = vmatprep.subr.mxu0 0.0
    %1350 = vmatpush2.msra.mxu0 0.0
    %1351 = vmatprep.subr.mxu0 0.0
    %1352 = vmatpush2.msra.mxu0 0.0
    %1353 = vmatprep.subr.mxu0 0.0
    %1354 = vmatpush2.msra.mxu0 0.0
    %1355 = vmatprep.subr.mxu0 0.0
    %1356 = vmatpush2.msra.mxu0 0.0
    %1357 = vmatprep.subr.mxu0 0.0
    %1358 = vmatpush2.msra.mxu0 0.0
    %1359 = vmatprep.subr.mxu0 0.0
    %1360 = vmatpush2.msra.mxu0 0.0
    %1361 = vmatprep.mubr.f32.mxu0 0.0
    %1362 = vmatmul.mubr.f32.gmra.mxu0 %v1295
    %v1363 = vpop.f32.mrf.mxu0
    %v1364 = vadd.f32 %v292, %v1363
    %v1365 = vpop.f32.mrf.mxu0
    %1366 = vdwg.mxu0
    %v1367 = vsel %vm367, %v1364, -inf
    %1368 = vmax.xlane.f32.xlu0 %v1367
    %v1369 = vpop.xlane.xlu0 %1368
    %v1370 = vsub.f32 %v1364, %v1369
    %v1371 = vmul.f32 %v1370, 1.442695
    %v1372 = vpow.pop %v1371
    %v1373 = vsel %vm367, %v1372, 0.0
    %1374 = vadd.xlane.f32.xlu0 %v1373
    %v1375 = vpop.xlane.xlu0 %1374
    %v1376 = vrcp.pop %v1375
    %v1377 = vmul.f32 %v1372, %v1376
    %s1378 = scalar_lea.vmem [#allocation12], 8
    %1379 = vst [vmem:[%s1378] sm:$0x3] %v1377
    %s1380 = scalar_lea.vmem [#allocation3], 10
    %v1381 = vld [vmem:[%s1380] sm:$0x3]
    %1382 = vmatprep.subr.mxu0 0.0
    %1383 = vmatpush1.msra.mxu0 0.0
    %1384 = vmatprep.subr.mxu0 0.0
    %1385 = vmatpush1.msra.mxu0 0.0
    %1386 = vmatprep.subr.mxu0 0.0
    %1387 = vmatpush1.msra.mxu0 0.0
    %1388 = vmatprep.subr.mxu0 0.0
    %1389 = vmatpush1.msra.mxu0 0.0
    %1390 = vmatprep.subr.mxu0 0.0
    %1391 = vmatpush1.msra.mxu0 0.0
    %1392 = vmatprep.subr.mxu0 0.0
    %1393 = vmatpush1.msra.mxu0 0.0
    %1394 = vmatprep.subr.mxu0 0.0
    %1395 = vmatpush1.msra.mxu0 0.0
    %1396 = vmatprep.subr.mxu0 0.0
    %1397 = vmatpush1.msra.mxu0 0.0
    %1398 = vmatprep.subr.mxu0 0.0
    %1399 = vmatpush1.msra.mxu0 0.0
    %1400 = vmatprep.subr.mxu0 0.0
    %1401 = vmatpush1.msra.mxu0 0.0
    %1402 = vmatprep.subr.mxu0 0.0
    %1403 = vmatpush1.msra.mxu0 0.0
    %1404 = vmatprep.subr.mxu0 0.0
    %1405 = vmatpush1.msra.mxu0 0.0
    %1406 = vmatprep.subr.mxu0 0.0
    %1407 = vmatpush1.msra.mxu0 %v111
    %1408 = vmatprep.subr.mxu0 0.0
    %1409 = vmatpush1.msra.mxu0 %v110
    %1410 = vmatprep.subr.mxu0 0.0
    %1411 = vmatpush1.msra.mxu0 %v109
    %1412 = vmatprep.subr.mxu0 0.0
    %1413 = vmatpush1.msra.mxu0 %v108
    %1414 = vmatprep.subr.mxu0 0.0
    %1415 = vmatpush2.msra.mxu0 0.0
    %1416 = vmatprep.subr.mxu0 0.0
    %1417 = vmatpush2.msra.mxu0 0.0
    %1418 = vmatprep.subr.mxu0 0.0
    %1419 = vmatpush2.msra.mxu0 0.0
    %1420 = vmatprep.subr.mxu0 0.0
    %1421 = vmatpush2.msra.mxu0 0.0
    %1422 = vmatprep.subr.mxu0 0.0
    %1423 = vmatpush2.msra.mxu0 0.0
    %1424 = vmatprep.subr.mxu0 0.0
    %1425 = vmatpush2.msra.mxu0 0.0
    %1426 = vmatprep.subr.mxu0 0.0
    %1427 = vmatpush2.msra.mxu0 0.0
    %1428 = vmatprep.subr.mxu0 0.0
    %1429 = vmatpush2.msra.mxu0 0.0
    %1430 = vmatprep.subr.mxu0 0.0
    %1431 = vmatpush2.msra.mxu0 0.0
    %1432 = vmatprep.subr.mxu0 0.0
    %1433 = vmatpush2.msra.mxu0 0.0
    %1434 = vmatprep.subr.mxu0 0.0
    %1435 = vmatpush2.msra.mxu0 0.0
    %1436 = vmatprep.subr.mxu0 0.0
    %1437 = vmatpush2.msra.mxu0 0.0
    %1438 = vmatprep.subr.mxu0 0.0
    %1439 = vmatpush2.msra.mxu0 0.0
    %1440 = vmatprep.subr.mxu0 0.0
    %1441 = vmatpush2.msra.mxu0 0.0
    %1442 = vmatprep.subr.mxu0 0.0
    %1443 = vmatpush2.msra.mxu0 0.0
    %1444 = vmatprep.subr.mxu0 0.0
    %1445 = vmatpush2.msra.mxu0 0.0
    %1446 = vmatprep.mubr.f32.mxu0 0.0
    %1447 = vmatmul.mubr.f32.gmra.mxu0 %v1295
    %v1448 = vpop.f32.mrf.mxu0
    %v1449 = vadd.f32 %v1381, %v1448
    %v1450 = vpop.f32.mrf.mxu0
    %1451 = vdwg.mxu0
    %v1452 = vxor.u32 %v1449, 2147483648
    %v1453 = vmul.f32 %v1452, 1.442695
    %v1454 = vpow.pop %v1453
    %v1455 = vadd.f32 %v1454, 1.0
    %v1456 = vrcp.pop %v1455
    %v1457 = vmul.f32 1.0, %v1456
    %1458 = vrot.lane.b32.xlu0 %v1293, 32
    %v1459 = vpop.permute.xlu0 %1458
    %v1461 = vmul.f32 %v1457, %v1459
    %s1462 = scalar_lea.vmem [#allocation6], 10
    %v1463 = vld [vmem:[%s1462] sm:$0x3]
    %1465 = vrot.lane.b32.xlu0 %v1461, 96
    %v1466 = vpop.permute.xlu0 %1465
    %v1467 = vsel %vm123, %v1466, 0
    %1469 = vmatprep.subr.mxu0 0.0
    %1470 = vmatpush1.msra.mxu0 0.0
    %1471 = vmatprep.subr.mxu0 0.0
    %1472 = vmatpush1.msra.mxu0 0.0
    %1473 = vmatprep.subr.mxu0 0.0
    %1474 = vmatpush1.msra.mxu0 0.0
    %1475 = vmatprep.subr.mxu0 0.0
    %1476 = vmatpush1.msra.mxu0 0.0
    %1477 = vmatprep.subr.mxu0 0.0
    %1478 = vmatpush1.msra.mxu0 0.0
    %1479 = vmatprep.subr.mxu0 0.0
    %1480 = vmatpush1.msra.mxu0 0.0
    %1481 = vmatprep.subr.mxu0 0.0
    %1482 = vmatpush1.msra.mxu0 0.0
    %1483 = vmatprep.subr.mxu0 0.0
    %1484 = vmatpush1.msra.mxu0 0.0
    %1485 = vmatprep.subr.mxu0 0.0
    %1486 = vmatpush1.msra.mxu0 0.0
    %1487 = vmatprep.subr.mxu0 0.0
    %1488 = vmatpush1.msra.mxu0 0.0
    %1489 = vmatprep.subr.mxu0 0.0
    %1490 = vmatpush1.msra.mxu0 0.0
    %1491 = vmatprep.subr.mxu0 0.0
    %1492 = vmatpush1.msra.mxu0 0.0
    %1493 = vmatprep.subr.mxu0 0.0
    %1494 = vmatpush1.msra.mxu0 %v115
    %1495 = vmatprep.subr.mxu0 0.0
    %1496 = vmatpush1.msra.mxu0 %v114
    %1497 = vmatprep.subr.mxu0 0.0
    %1498 = vmatpush1.msra.mxu0 %v113
    %1499 = vmatprep.subr.mxu0 0.0
    %1500 = vmatpush1.msra.mxu0 %v112
    %1501 = vmatprep.subr.mxu0 0.0
    %1502 = vmatpush2.msra.mxu0 0.0
    %1503 = vmatprep.subr.mxu0 0.0
    %1504 = vmatpush2.msra.mxu0 0.0
    %1505 = vmatprep.subr.mxu0 0.0
    %1506 = vmatpush2.msra.mxu0 0.0
    %1507 = vmatprep.subr.mxu0 0.0
    %1508 = vmatpush2.msra.mxu0 0.0
    %1509 = vmatprep.subr.mxu0 0.0
    %1510 = vmatpush2.msra.mxu0 0.0
    %1511 = vmatprep.subr.mxu0 0.0
    %1512 = vmatpush2.msra.mxu0 0.0
    %1513 = vmatprep.subr.mxu0 0.0
    %1514 = vmatpush2.msra.mxu0 0.0
    %1515 = vmatprep.subr.mxu0 0.0
    %1516 = vmatpush2.msra.mxu0 0.0
    %1517 = vmatprep.subr.mxu0 0.0
    %1518 = vmatpush2.msra.mxu0 0.0
    %1519 = vmatprep.subr.mxu0 0.0
    %1520 = vmatpush2.msra.mxu0 0.0
    %1521 = vmatprep.subr.mxu0 0.0
    %1522 = vmatpush2.msra.mxu0 0.0
    %1523 = vmatprep.subr.mxu0 0.0
    %1524 = vmatpush2.msra.mxu0 0.0
    %1525 = vmatprep.subr.mxu0 0.0
    %1526 = vmatpush2.msra.mxu0 0.0
    %1527 = vmatprep.subr.mxu0 0.0
    %1528 = vmatpush2.msra.mxu0 0.0
    %1529 = vmatprep.subr.mxu0 0.0
    %1530 = vmatpush2.msra.mxu0 0.0
    %1531 = vmatprep.subr.mxu0 0.0
    %1532 = vmatpush2.msra.mxu0 0.0
    %1533 = vmatprep.mubr.f32.mxu0 0.0
    %1534 = vmatmul.mubr.f32.gmra.mxu0 %v1467
    %v1535 = vpop.f32.mrf.mxu0
    %v1536 = vadd.f32 %v1463, %v1535
    %v1537 = vpop.f32.mrf.mxu0
    %1538 = vdwg.mxu0
    %v1539 = vtanh.pop %v1536
    %v1540 = vsub.f32 1.0, %v1457
    %v1541 = vmul.f32 %v1540, %v1293
    %v1542 = vmul.f32 %v1457, %v1539
    %v1543 = vadd.f32 %v1541, %v1542
    %v1545 = vsel %vm123, %v1543, 0
    %1547 = vmatprep.subr.mxu0 0.0
    %1548 = vmatpush1.msra.mxu0 0.0
    %1549 = vmatprep.subr.mxu0 0.0
    %1550 = vmatpush1.msra.mxu0 0.0
    %1551 = vmatprep.subr.mxu0 0.0
    %1552 = vmatpush1.msra.mxu0 0.0
    %1553 = vmatprep.subr.mxu0 0.0
    %1554 = vmatpush1.msra.mxu0 0.0
    %1555 = vmatprep.subr.mxu0 0.0
    %1556 = vmatpush1.msra.mxu0 0.0
    %1557 = vmatprep.subr.mxu0 0.0
    %1558 = vmatpush1.msra.mxu0 0.0
    %1559 = vmatprep.subr.mxu0 0.0
    %1560 = vmatpush1.msra.mxu0 0.0
    %1561 = vmatprep.subr.mxu0 0.0
    %1562 = vmatpush1.msra.mxu0 0.0
    %1563 = vmatprep.subr.mxu0 0.0
    %1564 = vmatpush1.msra.mxu0 0.0
    %1565 = vmatprep.subr.mxu0 0.0
    %1566 = vmatpush1.msra.mxu0 0.0
    %1567 = vmatprep.subr.mxu0 0.0
    %1568 = vmatpush1.msra.mxu0 0.0
    %1569 = vmatprep.subr.mxu0 0.0
    %1570 = vmatpush1.msra.mxu0 0.0
    %1571 = vmatprep.subr.mxu0 0.0
    %1572 = vmatpush1.msra.mxu0 %v119
    %1573 = vmatprep.subr.mxu0 0.0
    %1574 = vmatpush1.msra.mxu0 %v118
    %1575 = vmatprep.subr.mxu0 0.0
    %1576 = vmatpush1.msra.mxu0 %v117
    %1577 = vmatprep.subr.mxu0 0.0
    %1578 = vmatpush1.msra.mxu0 %v116
    %1579 = vmatprep.subr.mxu0 0.0
    %1580 = vmatpush2.msra.mxu0 0.0
    %1581 = vmatprep.subr.mxu0 0.0
    %1582 = vmatpush2.msra.mxu0 0.0
    %1583 = vmatprep.subr.mxu0 0.0
    %1584 = vmatpush2.msra.mxu0 0.0
    %1585 = vmatprep.subr.mxu0 0.0
    %1586 = vmatpush2.msra.mxu0 0.0
    %1587 = vmatprep.subr.mxu0 0.0
    %1588 = vmatpush2.msra.mxu0 0.0
    %1589 = vmatprep.subr.mxu0 0.0
    %1590 = vmatpush2.msra.mxu0 0.0
    %1591 = vmatprep.subr.mxu0 0.0
    %1592 = vmatpush2.msra.mxu0 0.0
    %1593 = vmatprep.subr.mxu0 0.0
    %1594 = vmatpush2.msra.mxu0 0.0
    %1595 = vmatprep.subr.mxu0 0.0
    %1596 = vmatpush2.msra.mxu0 0.0
    %1597 = vmatprep.subr.mxu0 0.0
    %1598 = vmatpush2.msra.mxu0 0.0
    %1599 = vmatprep.subr.mxu0 0.0
    %1600 = vmatpush2.msra.mxu0 0.0
    %1601 = vmatprep.subr.mxu0 0.0
    %1602 = vmatpush2.msra.mxu0 0.0
    %1603 = vmatprep.subr.mxu0 0.0
    %1604 = vmatpush2.msra.mxu0 0.0
    %1605 = vmatprep.subr.mxu0 0.0
    %1606 = vmatpush2.msra.mxu0 0.0
    %1607 = vmatprep.subr.mxu0 0.0
    %1608 = vmatpush2.msra.mxu0 0.0
    %1609 = vmatprep.subr.mxu0 0.0
    %1610 = vmatpush2.msra.mxu0 0.0
    %1611 = vmatprep.mubr.f32.mxu0 0.0
    %1612 = vmatmul.mubr.f32.gmra.mxu0 %v1545
    %v1613 = vpop.f32.mrf.mxu0
    %v1614 = vadd.f32 %v292, %v1613
    %v1615 = vpop.f32.mrf.mxu0
    %1616 = vdwg.mxu0
    %v1617 = vsel %vm367, %v1614, -inf
    %1618 = vmax.xlane.f32.xlu0 %v1617
    %v1619 = vpop.xlane.xlu0 %1618
    %v1620 = vsub.f32 %v1614, %v1619
    %v1621 = vmul.f32 %v1620, 1.442695
    %v1622 = vpow.pop %v1621
    %v1623 = vsel %vm367, %v1622, 0.0
    %1624 = vadd.xlane.f32.xlu0 %v1623
    %v1625 = vpop.xlane.xlu0 %1624
    %v1626 = vrcp.pop %v1625
    %v1627 = vmul.f32 %v1622, %v1626
    %s1628 = scalar_lea.vmem [#allocation12], 10
    %1629 = vst [vmem:[%s1628] sm:$0x3] %v1627
    %s1630 = scalar_lea.vmem [#allocation3], 12
    %v1631 = vld [vmem:[%s1630] sm:$0x3]
    %1632 = vmatprep.subr.mxu0 0.0
    %1633 = vmatpush1.msra.mxu0 0.0
    %1634 = vmatprep.subr.mxu0 0.0
    %1635 = vmatpush1.msra.mxu0 0.0
    %1636 = vmatprep.subr.mxu0 0.0
    %1637 = vmatpush1.msra.mxu0 0.0
    %1638 = vmatprep.subr.mxu0 0.0
    %1639 = vmatpush1.msra.mxu0 0.0
    %1640 = vmatprep.subr.mxu0 0.0
    %1641 = vmatpush1.msra.mxu0 0.0
    %1642 = vmatprep.subr.mxu0 0.0
    %1643 = vmatpush1.msra.mxu0 0.0
    %1644 = vmatprep.subr.mxu0 0.0
    %1645 = vmatpush1.msra.mxu0 0.0
    %1646 = vmatprep.subr.mxu0 0.0
    %1647 = vmatpush1.msra.mxu0 0.0
    %1648 = vmatprep.subr.mxu0 0.0
    %1649 = vmatpush1.msra.mxu0 0.0
    %1650 = vmatprep.subr.mxu0 0.0
    %1651 = vmatpush1.msra.mxu0 0.0
    %1652 = vmatprep.subr.mxu0 0.0
    %1653 = vmatpush1.msra.mxu0 0.0
    %1654 = vmatprep.subr.mxu0 0.0
    %1655 = vmatpush1.msra.mxu0 0.0
    %1656 = vmatprep.subr.mxu0 0.0
    %1657 = vmatpush1.msra.mxu0 %v111
    %1658 = vmatprep.subr.mxu0 0.0
    %1659 = vmatpush1.msra.mxu0 %v110
    %1660 = vmatprep.subr.mxu0 0.0
    %1661 = vmatpush1.msra.mxu0 %v109
    %1662 = vmatprep.subr.mxu0 0.0
    %1663 = vmatpush1.msra.mxu0 %v108
    %1664 = vmatprep.subr.mxu0 0.0
    %1665 = vmatpush2.msra.mxu0 0.0
    %1666 = vmatprep.subr.mxu0 0.0
    %1667 = vmatpush2.msra.mxu0 0.0
    %1668 = vmatprep.subr.mxu0 0.0
    %1669 = vmatpush2.msra.mxu0 0.0
    %1670 = vmatprep.subr.mxu0 0.0
    %1671 = vmatpush2.msra.mxu0 0.0
    %1672 = vmatprep.subr.mxu0 0.0
    %1673 = vmatpush2.msra.mxu0 0.0
    %1674 = vmatprep.subr.mxu0 0.0
    %1675 = vmatpush2.msra.mxu0 0.0
    %1676 = vmatprep.subr.mxu0 0.0
    %1677 = vmatpush2.msra.mxu0 0.0
    %1678 = vmatprep.subr.mxu0 0.0
    %1679 = vmatpush2.msra.mxu0 0.0
    %1680 = vmatprep.subr.mxu0 0.0
    %1681 = vmatpush2.msra.mxu0 0.0
    %1682 = vmatprep.subr.mxu0 0.0
    %1683 = vmatpush2.msra.mxu0 0.0
    %1684 = vmatprep.subr.mxu0 0.0
    %1685 = vmatpush2.msra.mxu0 0.0
    %1686 = vmatprep.subr.mxu0 0.0
    %1687 = vmatpush2.msra.mxu0 0.0
    %1688 = vmatprep.subr.mxu0 0.0
    %1689 = vmatpush2.msra.mxu0 0.0
    %1690 = vmatprep.subr.mxu0 0.0
    %1691 = vmatpush2.msra.mxu0 0.0
    %1692 = vmatprep.subr.mxu0 0.0
    %1693 = vmatpush2.msra.mxu0 0.0
    %1694 = vmatprep.subr.mxu0 0.0
    %1695 = vmatpush2.msra.mxu0 0.0
    %1696 = vmatprep.mubr.f32.mxu0 0.0
    %1697 = vmatmul.mubr.f32.gmra.mxu0 %v1545
    %v1698 = vpop.f32.mrf.mxu0
    %v1699 = vadd.f32 %v1631, %v1698
    %v1700 = vpop.f32.mrf.mxu0
    %1701 = vdwg.mxu0
    %v1702 = vxor.u32 %v1699, 2147483648
    %v1703 = vmul.f32 %v1702, 1.442695
    %v1704 = vpow.pop %v1703
    %v1705 = vadd.f32 %v1704, 1.0
    %v1706 = vrcp.pop %v1705
    %v1707 = vmul.f32 1.0, %v1706
    %1708 = vrot.lane.b32.xlu0 %v1543, 32
    %v1709 = vpop.permute.xlu0 %1708
    %v1711 = vmul.f32 %v1707, %v1709
    %s1712 = scalar_lea.vmem [#allocation6], 12
    %v1713 = vld [vmem:[%s1712] sm:$0x3]
    %1715 = vrot.lane.b32.xlu0 %v1711, 96
    %v1716 = vpop.permute.xlu0 %1715
    %v1717 = vsel %vm123, %v1716, 0
    %1719 = vmatprep.subr.mxu0 0.0
    %1720 = vmatpush1.msra.mxu0 0.0
    %1721 = vmatprep.subr.mxu0 0.0
    %1722 = vmatpush1.msra.mxu0 0.0
    %1723 = vmatprep.subr.mxu0 0.0
    %1724 = vmatpush1.msra.mxu0 0.0
    %1725 = vmatprep.subr.mxu0 0.0
    %1726 = vmatpush1.msra.mxu0 0.0
    %1727 = vmatprep.subr.mxu0 0.0
    %1728 = vmatpush1.msra.mxu0 0.0
    %1729 = vmatprep.subr.mxu0 0.0
    %1730 = vmatpush1.msra.mxu0 0.0
    %1731 = vmatprep.subr.mxu0 0.0
    %1732 = vmatpush1.msra.mxu0 0.0
    %1733 = vmatprep.subr.mxu0 0.0
    %1734 = vmatpush1.msra.mxu0 0.0
    %1735 = vmatprep.subr.mxu0 0.0
    %1736 = vmatpush1.msra.mxu0 0.0
    %1737 = vmatprep.subr.mxu0 0.0
    %1738 = vmatpush1.msra.mxu0 0.0
    %1739 = vmatprep.subr.mxu0 0.0
    %1740 = vmatpush1.msra.mxu0 0.0
    %1741 = vmatprep.subr.mxu0 0.0
    %1742 = vmatpush1.msra.mxu0 0.0
    %1743 = vmatprep.subr.mxu0 0.0
    %1744 = vmatpush1.msra.mxu0 %v115
    %1745 = vmatprep.subr.mxu0 0.0
    %1746 = vmatpush1.msra.mxu0 %v114
    %1747 = vmatprep.subr.mxu0 0.0
    %1748 = vmatpush1.msra.mxu0 %v113
    %1749 = vmatprep.subr.mxu0 0.0
    %1750 = vmatpush1.msra.mxu0 %v112
    %1751 = vmatprep.subr.mxu0 0.0
    %1752 = vmatpush2.msra.mxu0 0.0
    %1753 = vmatprep.subr.mxu0 0.0
    %1754 = vmatpush2.msra.mxu0 0.0
    %1755 = vmatprep.subr.mxu0 0.0
    %1756 = vmatpush2.msra.mxu0 0.0
    %1757 = vmatprep.subr.mxu0 0.0
    %1758 = vmatpush2.msra.mxu0 0.0
    %1759 = vmatprep.subr.mxu0 0.0
    %1760 = vmatpush2.msra.mxu0 0.0
    %1761 = vmatprep.subr.mxu0 0.0
    %1762 = vmatpush2.msra.mxu0 0.0
    %1763 = vmatprep.subr.mxu0 0.0
    %1764 = vmatpush2.msra.mxu0 0.0
    %1765 = vmatprep.subr.mxu0 0.0
    %1766 = vmatpush2.msra.mxu0 0.0
    %1767 = vmatprep.subr.mxu0 0.0
    %1768 = vmatpush2.msra.mxu0 0.0
    %1769 = vmatprep.subr.mxu0 0.0
    %1770 = vmatpush2.msra.mxu0 0.0
    %1771 = vmatprep.subr.mxu0 0.0
    %1772 = vmatpush2.msra.mxu0 0.0
    %1773 = vmatprep.subr.mxu0 0.0
    %1774 = vmatpush2.msra.mxu0 0.0
    %1775 = vmatprep.subr.mxu0 0.0
    %1776 = vmatpush2.msra.mxu0 0.0
    %1777 = vmatprep.subr.mxu0 0.0
    %1778 = vmatpush2.msra.mxu0 0.0
    %1779 = vmatprep.subr.mxu0 0.0
    %1780 = vmatpush2.msra.mxu0 0.0
    %1781 = vmatprep.subr.mxu0 0.0
    %1782 = vmatpush2.msra.mxu0 0.0
    %1783 = vmatprep.mubr.f32.mxu0 0.0
    %1784 = vmatmul.mubr.f32.gmra.mxu0 %v1717
    %v1785 = vpop.f32.mrf.mxu0
    %v1786 = vadd.f32 %v1713, %v1785
    %v1787 = vpop.f32.mrf.mxu0
    %1788 = vdwg.mxu0
    %v1789 = vtanh.pop %v1786
    %v1790 = vsub.f32 1.0, %v1707
    %v1791 = vmul.f32 %v1790, %v1543
    %v1792 = vmul.f32 %v1707, %v1789
    %v1793 = vadd.f32 %v1791, %v1792
    %v1795 = vsel %vm123, %v1793, 0
    %1797 = vmatprep.subr.mxu0 0.0
    %1798 = vmatpush1.msra.mxu0 0.0
    %1799 = vmatprep.subr.mxu0 0.0
    %1800 = vmatpush1.msra.mxu0 0.0
    %1801 = vmatprep.subr.mxu0 0.0
    %1802 = vmatpush1.msra.mxu0 0.0
    %1803 = vmatprep.subr.mxu0 0.0
    %1804 = vmatpush1.msra.mxu0 0.0
    %1805 = vmatprep.subr.mxu0 0.0
    %1806 = vmatpush1.msra.mxu0 0.0
    %1807 = vmatprep.subr.mxu0 0.0
    %1808 = vmatpush1.msra.mxu0 0.0
    %1809 = vmatprep.subr.mxu0 0.0
    %1810 = vmatpush1.msra.mxu0 0.0
    %1811 = vmatprep.subr.mxu0 0.0
    %1812 = vmatpush1.msra.mxu0 0.0
    %1813 = vmatprep.subr.mxu0 0.0
    %1814 = vmatpush1.msra.mxu0 0.0
    %1815 = vmatprep.subr.mxu0 0.0
    %1816 = vmatpush1.msra.mxu0 0.0
    %1817 = vmatprep.subr.mxu0 0.0
    %1818 = vmatpush1.msra.mxu0 0.0
    %1819 = vmatprep.subr.mxu0 0.0
    %1820 = vmatpush1.msra.mxu0 0.0
    %1821 = vmatprep.subr.mxu0 0.0
    %1822 = vmatpush1.msra.mxu0 %v119
    %1823 = vmatprep.subr.mxu0 0.0
    %1824 = vmatpush1.msra.mxu0 %v118
    %1825 = vmatprep.subr.mxu0 0.0
    %1826 = vmatpush1.msra.mxu0 %v117
    %1827 = vmatprep.subr.mxu0 0.0
    %1828 = vmatpush1.msra.mxu0 %v116
    %1829 = vmatprep.subr.mxu0 0.0
    %1830 = vmatpush2.msra.mxu0 0.0
    %1831 = vmatprep.subr.mxu0 0.0
    %1832 = vmatpush2.msra.mxu0 0.0
    %1833 = vmatprep.subr.mxu0 0.0
    %1834 = vmatpush2.msra.mxu0 0.0
    %1835 = vmatprep.subr.mxu0 0.0
    %1836 = vmatpush2.msra.mxu0 0.0
    %1837 = vmatprep.subr.mxu0 0.0
    %1838 = vmatpush2.msra.mxu0 0.0
    %1839 = vmatprep.subr.mxu0 0.0
    %1840 = vmatpush2.msra.mxu0 0.0
    %1841 = vmatprep.subr.mxu0 0.0
    %1842 = vmatpush2.msra.mxu0 0.0
    %1843 = vmatprep.subr.mxu0 0.0
    %1844 = vmatpush2.msra.mxu0 0.0
    %1845 = vmatprep.subr.mxu0 0.0
    %1846 = vmatpush2.msra.mxu0 0.0
    %1847 = vmatprep.subr.mxu0 0.0
    %1848 = vmatpush2.msra.mxu0 0.0
    %1849 = vmatprep.subr.mxu0 0.0
    %1850 = vmatpush2.msra.mxu0 0.0
    %1851 = vmatprep.subr.mxu0 0.0
    %1852 = vmatpush2.msra.mxu0 0.0
    %1853 = vmatprep.subr.mxu0 0.0
    %1854 = vmatpush2.msra.mxu0 0.0
    %1855 = vmatprep.subr.mxu0 0.0
    %1856 = vmatpush2.msra.mxu0 0.0
    %1857 = vmatprep.subr.mxu0 0.0
    %1858 = vmatpush2.msra.mxu0 0.0
    %1859 = vmatprep.subr.mxu0 0.0
    %1860 = vmatpush2.msra.mxu0 0.0
    %1861 = vmatprep.mubr.f32.mxu0 0.0
    %1862 = vmatmul.mubr.f32.gmra.mxu0 %v1795
    %v1863 = vpop.f32.mrf.mxu0
    %v1864 = vadd.f32 %v292, %v1863
    %v1865 = vpop.f32.mrf.mxu0
    %1866 = vdwg.mxu0
    %v1867 = vsel %vm367, %v1864, -inf
    %1868 = vmax.xlane.f32.xlu0 %v1867
    %v1869 = vpop.xlane.xlu0 %1868
    %v1870 = vsub.f32 %v1864, %v1869
    %v1871 = vmul.f32 %v1870, 1.442695
    %v1872 = vpow.pop %v1871
    %v1873 = vsel %vm367, %v1872, 0.0
    %1874 = vadd.xlane.f32.xlu0 %v1873
    %v1875 = vpop.xlane.xlu0 %1874
    %v1876 = vrcp.pop %v1875
    %v1877 = vmul.f32 %v1872, %v1876
    %s1878 = scalar_lea.vmem [#allocation12], 12
    %1879 = vst [vmem:[%s1878] sm:$0x3] %v1877
    %s1880 = scalar_lea.vmem [#allocation3], 14
    %v1881 = vld [vmem:[%s1880] sm:$0x3]
    %1882 = vmatprep.subr.mxu0 0.0
    %1883 = vmatpush1.msra.mxu0 0.0
    %1884 = vmatprep.subr.mxu0 0.0
    %1885 = vmatpush1.msra.mxu0 0.0
    %1886 = vmatprep.subr.mxu0 0.0
    %1887 = vmatpush1.msra.mxu0 0.0
    %1888 = vmatprep.subr.mxu0 0.0
    %1889 = vmatpush1.msra.mxu0 0.0
    %1890 = vmatprep.subr.mxu0 0.0
    %1891 = vmatpush1.msra.mxu0 0.0
    %1892 = vmatprep.subr.mxu0 0.0
    %1893 = vmatpush1.msra.mxu0 0.0
    %1894 = vmatprep.subr.mxu0 0.0
    %1895 = vmatpush1.msra.mxu0 0.0
    %1896 = vmatprep.subr.mxu0 0.0
    %1897 = vmatpush1.msra.mxu0 0.0
    %1898 = vmatprep.subr.mxu0 0.0
    %1899 = vmatpush1.msra.mxu0 0.0
    %1900 = vmatprep.subr.mxu0 0.0
    %1901 = vmatpush1.msra.mxu0 0.0
    %1902 = vmatprep.subr.mxu0 0.0
    %1903 = vmatpush1.msra.mxu0 0.0
    %1904 = vmatprep.subr.mxu0 0.0
    %1905 = vmatpush1.msra.mxu0 0.0
    %1906 = vmatprep.subr.mxu0 0.0
    %1907 = vmatpush1.msra.mxu0 %v111
    %1908 = vmatprep.subr.mxu0 0.0
    %1909 = vmatpush1.msra.mxu0 %v110
    %1910 = vmatprep.subr.mxu0 0.0
    %1911 = vmatpush1.msra.mxu0 %v109
    %1912 = vmatprep.subr.mxu0 0.0
    %1913 = vmatpush1.msra.mxu0 %v108
    %1914 = vmatprep.subr.mxu0 0.0
    %1915 = vmatpush2.msra.mxu0 0.0
    %1916 = vmatprep.subr.mxu0 0.0
    %1917 = vmatpush2.msra.mxu0 0.0
    %1918 = vmatprep.subr.mxu0 0.0
    %1919 = vmatpush2.msra.mxu0 0.0
    %1920 = vmatprep.subr.mxu0 0.0
    %1921 = vmatpush2.msra.mxu0 0.0
    %1922 = vmatprep.subr.mxu0 0.0
    %1923 = vmatpush2.msra.mxu0 0.0
    %1924 = vmatprep.subr.mxu0 0.0
    %1925 = vmatpush2.msra.mxu0 0.0
    %1926 = vmatprep.subr.mxu0 0.0
    %1927 = vmatpush2.msra.mxu0 0.0
    %1928 = vmatprep.subr.mxu0 0.0
    %1929 = vmatpush2.msra.mxu0 0.0
    %1930 = vmatprep.subr.mxu0 0.0
    %1931 = vmatpush2.msra.mxu0 0.0
    %1932 = vmatprep.subr.mxu0 0.0
    %1933 = vmatpush2.msra.mxu0 0.0
    %1934 = vmatprep.subr.mxu0 0.0
    %1935 = vmatpush2.msra.mxu0 0.0
    %1936 = vmatprep.subr.mxu0 0.0
    %1937 = vmatpush2.msra.mxu0 0.0
    %1938 = vmatprep.subr.mxu0 0.0
    %1939 = vmatpush2.msra.mxu0 0.0
    %1940 = vmatprep.subr.mxu0 0.0
    %1941 = vmatpush2.msra.mxu0 0.0
    %1942 = vmatprep.subr.mxu0 0.0
    %1943 = vmatpush2.msra.mxu0 0.0
    %1944 = vmatprep.subr.mxu0 0.0
    %1945 = vmatpush2.msra.mxu0 0.0
    %1946 = vmatprep.mubr.f32.mxu0 0.0
    %1947 = vmatmul.mubr.f32.gmra.mxu0 %v1795
    %v1948 = vpop.f32.mrf.mxu0
    %v1949 = vadd.f32 %v1881, %v1948
    %v1950 = vpop.f32.mrf.mxu0
    %1951 = vdwg.mxu0
    %v1952 = vxor.u32 %v1949, 2147483648
    %v1953 = vmul.f32 %v1952, 1.442695
    %v1954 = vpow.pop %v1953
    %v1955 = vadd.f32 %v1954, 1.0
    %v1956 = vrcp.pop %v1955
    %v1957 = vmul.f32 1.0, %v1956
    %1958 = vrot.lane.b32.xlu0 %v1793, 32
    %v1959 = vpop.permute.xlu0 %1958
    %v1961 = vmul.f32 %v1957, %v1959
    %s1962 = scalar_lea.vmem [#allocation6], 14
    %v1963 = vld [vmem:[%s1962] sm:$0x3]
    %1965 = vrot.lane.b32.xlu0 %v1961, 96
    %v1966 = vpop.permute.xlu0 %1965
    %v1967 = vsel %vm123, %v1966, 0
    %1969 = vmatprep.subr.mxu0 0.0
    %1970 = vmatpush1.msra.mxu0 0.0
    %1971 = vmatprep.subr.mxu0 0.0
    %1972 = vmatpush1.msra.mxu0 0.0
    %1973 = vmatprep.subr.mxu0 0.0
    %1974 = vmatpush1.msra.mxu0 0.0
    %1975 = vmatprep.subr.mxu0 0.0
    %1976 = vmatpush1.msra.mxu0 0.0
    %1977 = vmatprep.subr.mxu0 0.0
    %1978 = vmatpush1.msra.mxu0 0.0
    %1979 = vmatprep.subr.mxu0 0.0
    %1980 = vmatpush1.msra.mxu0 0.0
    %1981 = vmatprep.subr.mxu0 0.0
    %1982 = vmatpush1.msra.mxu0 0.0
    %1983 = vmatprep.subr.mxu0 0.0
    %1984 = vmatpush1.msra.mxu0 0.0
    %1985 = vmatprep.subr.mxu0 0.0
    %1986 = vmatpush1.msra.mxu0 0.0
    %1987 = vmatprep.subr.mxu0 0.0
    %1988 = vmatpush1.msra.mxu0 0.0
    %1989 = vmatprep.subr.mxu0 0.0
    %1990 = vmatpush1.msra.mxu0 0.0
    %1991 = vmatprep.subr.mxu0 0.0
    %1992 = vmatpush1.msra.mxu0 0.0
    %1993 = vmatprep.subr.mxu0 0.0
    %1994 = vmatpush1.msra.mxu0 %v115
    %1995 = vmatprep.subr.mxu0 0.0
    %1996 = vmatpush1.msra.mxu0 %v114
    %1997 = vmatprep.subr.mxu0 0.0
    %1998 = vmatpush1.msra.mxu0 %v113
    %1999 = vmatprep.subr.mxu0 0.0
    %2000 = vmatpush1.msra.mxu0 %v112
    %2001 = vmatprep.subr.mxu0 0.0
    %2002 = vmatpush2.msra.mxu0 0.0
    %2003 = vmatprep.subr.mxu0 0.0
    %2004 = vmatpush2.msra.mxu0 0.0
    %2005 = vmatprep.subr.mxu0 0.0
    %2006 = vmatpush2.msra.mxu0 0.0
    %2007 = vmatprep.subr.mxu0 0.0
    %2008 = vmatpush2.msra.mxu0 0.0
    %2009 = vmatprep.subr.mxu0 0.0
    %2010 = vmatpush2.msra.mxu0 0.0
    %2011 = vmatprep.subr.mxu0 0.0
    %2012 = vmatpush2.msra.mxu0 0.0
    %2013 = vmatprep.subr.mxu0 0.0
    %2014 = vmatpush2.msra.mxu0 0.0
    %2015 = vmatprep.subr.mxu0 0.0
    %2016 = vmatpush2.msra.mxu0 0.0
    %2017 = vmatprep.subr.mxu0 0.0
    %2018 = vmatpush2.msra.mxu0 0.0
    %2019 = vmatprep.subr.mxu0 0.0
    %2020 = vmatpush2.msra.mxu0 0.0
    %2021 = vmatprep.subr.mxu0 0.0
    %2022 = vmatpush2.msra.mxu0 0.0
    %2023 = vmatprep.subr.mxu0 0.0
    %2024 = vmatpush2.msra.mxu0 0.0
    %2025 = vmatprep.subr.mxu0 0.0
    %2026 = vmatpush2.msra.mxu0 0.0
    %2027 = vmatprep.subr.mxu0 0.0
    %2028 = vmatpush2.msra.mxu0 0.0
    %2029 = vmatprep.subr.mxu0 0.0
    %2030 = vmatpush2.msra.mxu0 0.0
    %2031 = vmatprep.subr.mxu0 0.0
    %2032 = vmatpush2.msra.mxu0 0.0
    %2033 = vmatprep.mubr.f32.mxu0 0.0
    %2034 = vmatmul.mubr.f32.gmra.mxu0 %v1967
    %v2035 = vpop.f32.mrf.mxu0
    %v2036 = vadd.f32 %v1963, %v2035
    %v2037 = vpop.f32.mrf.mxu0
    %2038 = vdwg.mxu0
    %v2039 = vtanh.pop %v2036
    %v2040 = vsub.f32 1.0, %v1957
    %v2041 = vmul.f32 %v2040, %v1793
    %v2042 = vmul.f32 %v1957, %v2039
    %v2043 = vadd.f32 %v2041, %v2042
    %v2045 = vsel %vm123, %v2043, 0
    %2047 = vmatprep.subr.mxu0 0.0
    %2048 = vmatpush1.msra.mxu0 0.0
    %2049 = vmatprep.subr.mxu0 0.0
    %2050 = vmatpush1.msra.mxu0 0.0
    %2051 = vmatprep.subr.mxu0 0.0
    %2052 = vmatpush1.msra.mxu0 0.0
    %2053 = vmatprep.subr.mxu0 0.0
    %2054 = vmatpush1.msra.mxu0 0.0
    %2055 = vmatprep.subr.mxu0 0.0
    %2056 = vmatpush1.msra.mxu0 0.0
    %2057 = vmatprep.subr.mxu0 0.0
    %2058 = vmatpush1.msra.mxu0 0.0
    %2059 = vmatprep.subr.mxu0 0.0
    %2060 = vmatpush1.msra.mxu0 0.0
    %2061 = vmatprep.subr.mxu0 0.0
    %2062 = vmatpush1.msra.mxu0 0.0
    %2063 = vmatprep.subr.mxu0 0.0
    %2064 = vmatpush1.msra.mxu0 0.0
    %2065 = vmatprep.subr.mxu0 0.0
    %2066 = vmatpush1.msra.mxu0 0.0
    %2067 = vmatprep.subr.mxu0 0.0
    %2068 = vmatpush1.msra.mxu0 0.0
    %2069 = vmatprep.subr.mxu0 0.0
    %2070 = vmatpush1.msra.mxu0 0.0
    %2071 = vmatprep.subr.mxu0 0.0
    %2072 = vmatpush1.msra.mxu0 %v119
    %2073 = vmatprep.subr.mxu0 0.0
    %2074 = vmatpush1.msra.mxu0 %v118
    %2075 = vmatprep.subr.mxu0 0.0
    %2076 = vmatpush1.msra.mxu0 %v117
    %2077 = vmatprep.subr.mxu0 0.0
    %2078 = vmatpush1.msra.mxu0 %v116
    %2079 = vmatprep.subr.mxu0 0.0
    %2080 = vmatpush2.msra.mxu0 0.0
    %2081 = vmatprep.subr.mxu0 0.0
    %2082 = vmatpush2.msra.mxu0 0.0
    %2083 = vmatprep.subr.mxu0 0.0
    %2084 = vmatpush2.msra.mxu0 0.0
    %2085 = vmatprep.subr.mxu0 0.0
    %2086 = vmatpush2.msra.mxu0 0.0
    %2087 = vmatprep.subr.mxu0 0.0
    %2088 = vmatpush2.msra.mxu0 0.0
    %2089 = vmatprep.subr.mxu0 0.0
    %2090 = vmatpush2.msra.mxu0 0.0
    %2091 = vmatprep.subr.mxu0 0.0
    %2092 = vmatpush2.msra.mxu0 0.0
    %2093 = vmatprep.subr.mxu0 0.0
    %2094 = vmatpush2.msra.mxu0 0.0
    %2095 = vmatprep.subr.mxu0 0.0
    %2096 = vmatpush2.msra.mxu0 0.0
    %2097 = vmatprep.subr.mxu0 0.0
    %2098 = vmatpush2.msra.mxu0 0.0
    %2099 = vmatprep.subr.mxu0 0.0
    %2100 = vmatpush2.msra.mxu0 0.0
    %2101 = vmatprep.subr.mxu0 0.0
    %2102 = vmatpush2.msra.mxu0 0.0
    %2103 = vmatprep.subr.mxu0 0.0
    %2104 = vmatpush2.msra.mxu0 0.0
    %2105 = vmatprep.subr.mxu0 0.0
    %2106 = vmatpush2.msra.mxu0 0.0
    %2107 = vmatprep.subr.mxu0 0.0
    %2108 = vmatpush2.msra.mxu0 0.0
    %2109 = vmatprep.subr.mxu0 0.0
    %2110 = vmatpush2.msra.mxu0 0.0
    %2111 = vmatprep.mubr.f32.mxu0 0.0
    %2112 = vmatmul.mubr.f32.gmra.mxu0 %v2045
    %v2113 = vpop.f32.mrf.mxu0
    %v2114 = vadd.f32 %v292, %v2113
    %v2115 = vpop.f32.mrf.mxu0
    %2116 = vdwg.mxu0
    %v2117 = vsel %vm367, %v2114, -inf
    %2118 = vmax.xlane.f32.xlu0 %v2117
    %v2119 = vpop.xlane.xlu0 %2118
    %v2120 = vsub.f32 %v2114, %v2119
    %v2121 = vmul.f32 %v2120, 1.442695
    %v2122 = vpow.pop %v2121
    %v2123 = vsel %vm367, %v2122, 0.0
    %2124 = vadd.xlane.f32.xlu0 %v2123
    %v2125 = vpop.xlane.xlu0 %2124
    %v2126 = vrcp.pop %v2125
    %v2127 = vmul.f32 %v2122, %v2126
    %s2128 = scalar_lea.vmem [#allocation12], 14
    %2129 = vst [vmem:[%s2128] sm:$0x3] %v2127
    %vm2130 = vcmask 254976
    %2131 = vst.msk [vmem:[#allocation2] sm:$0x3] %vm2130, %v2043
    // Predicated region
    $region54: #{tpu_custom_call.1} parent=1 // pred_check
      _
    $region55: #{tpu_custom_call.1} parent=1 // pred_check_branch
      %2133 = sbr.rel (0) target = $region57
    $region56: #{tpu_custom_call.1} parent=1 // pred_region
      %s2135 = ssub.s32 256, 256
      %2136 = vsyncadd [#allocation5], %s2135
      %s2137 = sshll.u32 [#allocation12], 4
      %s2138 = int_to_ptr.vmem [resolvable:$true] %s2137
      %2143 = dma.vmem_to_hbm [thread:$0]  %s2138, 256, %s7, [#allocation5], 32, 32, 2
    $region57: #{tpu_custom_call.1} parent=1 // pred_fallthru
      _
    // Predicated region
    $region58: #{tpu_custom_call.1} parent=1 // pred_check
      _
    $region59: #{tpu_custom_call.1} parent=1 // pred_check_branch
      %2145 = sbr.rel (0) target = $region61
    $region60: #{tpu_custom_call.1} parent=1 // pred_region
      %2146 = dma.done [#allocation5], 256
    $region61: #{tpu_custom_call.1} parent=1 // pred_fallthru
      _
    %2147 = vsyncpa [#allocation4], 1
    %2148 = vsyncpa [#allocation7], 1
    %2149 = vsyncpa [#allocation10], 1
    %2150 = vsyncpa [#allocation5], 1

</llo_original>
